<compile_context>
chip_gen: v7x
topology: tpu7x:2x2x1
jax: 0.10.0
libtpu: 0.0.40
codegen_flags: <defaults>
</compile_context>

<pallas_src>
import functools

import jax
import jax.numpy as jnp
from jax.experimental import pallas as pl
from jax.experimental.pallas import tpu as pltpu


def _round_up(x, m):
    return ((x + m - 1) // m) * m


def _tpu_kind():
    try:
        return jax.devices()[0].device_kind.lower()
    except Exception:
        return ""


def _vmem_budget_bytes(kind):
    # v2/v3: ~16 MiB VMEM; v4/v5e/v6e: 128 MiB physical; unknown / v7x-class: 64 MiB physical.
    if "v2" in kind or "v3" in kind:
        return 12 * 1024 * 1024
    if "v4" in kind or "v5" in kind or "v6" in kind:
        return 96 * 1024 * 1024
    return 48 * 1024 * 1024


def _default_tq_target(kind, n):
    if "v4" in kind or "v5" in kind or "v6" in kind:
        return 512
    return 256 if n < 8192 else 128


def _vmem_estimate_bytes(tq, n, c, c8p):
    """Rough double-buffered footprint of every BlockSpec-managed operand."""
    x_in = 2 * tq * c * 4          # x stripe, f32
    wq = 2 * c * c8p * 2           # Wq, bf16
    bq = 2 * c8p * 4               # bq, f32
    kt = 2 * c8p * n * 2           # K^T per batch, bf16
    v = 2 * n * c * 2              # V per batch, bf16
    out = 2 * tq * c * 4           # out stripe, f32
    attn = 2 * tq * n * 2          # attention stripe, bf16
    return x_in + wq + bq + kt + v + out + attn


def _choose_tq(n, c, c8p, target, budget):
    tq = n if n <= target else max(8, (target // 8) * 8)
    while tq > 8 and _vmem_estimate_bytes(tq, n, c, c8p) > 0.75 * budget:
        tq = max(8, ((tq // 2) // 8) * 8)
    return tq


def _self_attn_kernel(x_ref, wq_ref, bq_ref, kt_ref, v_ref, gamma_ref,
                      out_ref, attn_ref):
    x_tile = x_ref[0]                                              # (TQ, C) f32 (residual)

    # Per-tile query projection (1x1 conv): x @ Wq + bq, zero-padded to C8p lanes.
    q = jnp.dot(x_tile.astype(jnp.bfloat16), wq_ref[...],
                preferred_element_type=jnp.float32) + bq_ref[...]  # (TQ, C8p) f32
    q = q.astype(jnp.bfloat16)

    # energy[i, j] = <q_i, k_j>; K was pre-transposed (and zero-padded) in the wrapper,
    # so this is a plain matmul with no per-tile cross-lane transpose.
    energy = jnp.dot(q, kt_ref[0], preferred_element_type=jnp.float32)   # (TQ, N) f32

    # Numerically stable softmax over the key axis (f32).  Exact reciprocal (TQ divides only),
    # so the emitted attention rows sum to 1 up to f32/bf16 rounding.
    m = jnp.max(energy, axis=-1, keepdims=True)
    e = jnp.exp(energy - m)
    inv = 1.0 / jnp.sum(e, axis=-1, keepdims=True)
    attn = e * inv                                                 # (TQ, N) f32

    out = jnp.dot(attn.astype(jnp.bfloat16), v_ref[0],
                  preferred_element_type=jnp.float32)              # (TQ, C) f32

    gamma = gamma_ref[0]                                           # SMEM scalar
    # TODO(synk): if profiling shows the out stream matters for C < 128, present a lane-dense
    # (TQ*C/128, 128) out layout instead of masked partial stores.
    out_ref[0] = (gamma * out + x_tile).astype(out_ref.dtype)
    attn_ref[0] = attn.astype(attn_ref.dtype)                      # bf16 writeback


@functools.partial(jax.jit, static_argnames=("tq", "attn_dtype"))
def self_attn_forward(x_nchw, wq, bq, wk, bk, wv, bv, gamma, *,
                      tq=None, attn_dtype=jnp.bfloat16):
    """x_nchw: (B, C, W, H).  wq/wk: (C//8, C), wv: (C, C), 1-D biases, gamma scalar-like.

    Returns (out: (B, C, W, H) f32, attention: (B, N, N) attn_dtype).  The attention map is
    emitted in bfloat16 by default (halves the dominant HBM write stream); pass
    attn_dtype=jnp.float32 if a downstream consumer needs full precision.
    """
    B, C, W, H = x_nchw.shape
    N = W * H
    C8 = wq.shape[0]
    C8p = _round_up(max(C8, 1), 128)     # pad tiny C//8 width to a lane-aligned 128

    kind = _tpu_kind()
    budget = _vmem_budget_bytes(kind)
    target = tq if tq is not None else _default_tq_target(kind, N)
    TQ = _choose_tq(N, C, C8p, target, budget)
    T = pl.cdiv(N, TQ)                   # ragged last tile allowed (clipped by Pallas)

    # NCHW -> (B, N, C), kept f32 for the residual path.
    # TODO(synk): carry NHWC/(B,N,C) activations through the surrounding model so this
    # transpose and the one on the way out disappear (they cost HBM traffic comparable to
    # the kernel's own x reads).
    x_flat = jnp.transpose(x_nchw.reshape(B, C, N), (0, 2, 1)).astype(jnp.float32)

    # Hoisted K / V projections (plain GEMMs in XLA).  K is produced pre-transposed as
    # (B, C8p, N) with zero-padded rows; V as (B, N, C).  Both stored bf16 for the MXU.
    wk_pad = jnp.zeros((C8p, C), jnp.float32).at[:C8, :].set(wk.astype(jnp.float32))
    bk_pad = jnp.zeros((C8p,), jnp.float32).at[:C8].set(bk.astype(jnp.float32))
    k_t = (jnp.einsum('oc,bnc->bon', wk_pad, x_flat)
           + bk_pad[None, :, None]).astype(jnp.bfloat16)               # (B, C8p, N)

    v = (jnp.einsum('oc,bnc->bno', wv.astype(jnp.float32), x_flat)
         + bv.astype(jnp.float32)[None, None, :]).astype(jnp.bfloat16)  # (B, N, C)

    # Query projection weights stay a kernel input (q computed per tile from the x stripe).
    wq_pad = jnp.zeros((C, C8p), jnp.float32)
    wq_pad = wq_pad.at[:, :C8].set(jnp.transpose(wq).astype(jnp.float32)).astype(jnp.bfloat16)
    bq_pad = jnp.zeros((1, C8p), jnp.float32).at[0, :C8].set(bq.astype(jnp.float32))

    gamma1 = jnp.asarray(gamma, jnp.float32).reshape((1,))

    out_flat, attention = pl.pallas_call(
        _self_attn_kernel,
        out_shape=(
            jax.ShapeDtypeStruct((B, N, C), jnp.float32),
            jax.ShapeDtypeStruct((B, N, N), attn_dtype),
        ),
        grid_spec=pltpu.PrefetchScalarGridSpec(
            num_scalar_prefetch=0,
            grid=(B, T),
            in_specs=[
                pl.BlockSpec((1, TQ, C), lambda b, t: (b, t, 0)),      # x stripe (residual + q)
                pl.BlockSpec((C, C8p), lambda b, t: (0, 0)),           # Wq (bf16, padded)
                pl.BlockSpec((1, C8p), lambda b, t: (0, 0)),           # bq (f32, padded)
                pl.BlockSpec((1, C8p, N), lambda b, t: (b, 0, 0)),     # K^T per batch (bf16)
                pl.BlockSpec((1, N, C), lambda b, t: (b, 0, 0)),       # V per batch (bf16)
                pl.BlockSpec(memory_space=pltpu.MemorySpace.SMEM),     # gamma scalar
            ],
            out_specs=[
                pl.BlockSpec((1, TQ, C), lambda b, t: (b, t, 0)),      # out stripe (f32)
                pl.BlockSpec((1, TQ, N), lambda b, t: (b, t, 0)),      # attention stripe (bf16)
            ],
        ),
        compiler_params=pltpu.CompilerParams(
            # No cross-tile state anymore: both axes independent -> both shardable (v7x megacore).
            dimension_semantics=("parallel", "parallel"),
            vmem_limit_bytes=budget,
        ),
    )(x_flat, wq_pad, bq_pad, k_t, v, gamma1)

    # (B, N, C) -> (B, C, W, H).
    out = jnp.transpose(out_flat, (0, 2, 1)).reshape(B, C, W, H)
    return out, attention


def _reference(x_nchw, wq, bq, wk, bk, wv, bv, gamma):
    B, C, W, H = x_nchw.shape
    N = W * H
    xf = x_nchw.reshape(B, C, N)                                         # (B, C, N)
    q = jnp.einsum('oc,bcn->bon', wq, xf) + bq[None, :, None]            # (B, C8, N)
    k = jnp.einsum('oc,bcn->bon', wk, xf) + bk[None, :, None]            # (B, C8, N)
    v = jnp.einsum('oc,bcn->bon', wv, xf) + bv[None, :, None]            # (B, C, N)
    energy = jnp.einsum('bci,bcj->bij', q, k)                            # (B, N, N)
    attention = jax.nn.softmax(energy, axis=-1)
    out = jnp.einsum('bcj,bij->bci', v, attention)                       # (B, C, N)
    out = gamma * out.reshape(B, C, W, H) + x_nchw
    return out, attention


if __name__ == "__main__":
    B, C, W, H = 2, 32, 16, 16     # N = 256 -> two query tiles of 128
    C8 = C // 8

    key = jax.random.PRNGKey(0)
    kx, kwq, kbq, kwk, kbk, kwv, kbv = jax.random.split(key, 7)

    x = jax.random.normal(kx, (B, C, W, H), dtype=jnp.float32)

    # Conv2d 1x1 weights collapse to (out, in) matrices.
    wq = jax.random.normal(kwq, (C8, C), dtype=jnp.float32) * 0.1
    bq = jax.random.normal(kbq, (C8,), dtype=jnp.float32) * 0.1
    wk = jax.random.normal(kwk, (C8, C), dtype=jnp.float32) * 0.1
    bk = jax.random.normal(kbk, (C8,), dtype=jnp.float32) * 0.1
    wv = jax.random.normal(kwv, (C, C), dtype=jnp.float32) * 0.1
    bv = jax.random.normal(kbv, (C,), dtype=jnp.float32) * 0.1
    # The module initializes gamma to 0; use a nonzero value so the attention->out path is
    # actually exercised by the numerical check.
    gamma = jnp.full((1,), 0.5, dtype=jnp.float32)

    out, attention = self_attn_forward(x, wq, bq, wk, bk, wv, bv, gamma, tq=128)
    out = jax.block_until_ready(out)
    attention = jax.block_until_ready(attention)

    out_ref, attn_ref = _reference(x, wq, bq, wk, bk, wv, bv, gamma)
    assert out.shape == (B, C, W, H) and attention.shape == (B, W * H, W * H)
    # bf16 MXU operands (f32 accumulation) + bf16 attention writeback => loose tolerances.
    attn_f32 = attention.astype(jnp.float32)
    assert jnp.allclose(out, out_ref, atol=3e-2, rtol=3e-2), \
        float(jnp.max(jnp.abs(out - out_ref)))
    assert jnp.allclose(attn_f32, attn_ref, atol=1e-2, rtol=1e-2), \
        float(jnp.max(jnp.abs(attn_f32 - attn_ref)))

    print("KERNEL_OK")
</pallas_src>

<mosaic_0001>
module attributes {stable_mosaic.version = 11 : i64} {
  func.func @_self_attn_kernel(%arg0: i32, %arg1: i32, %arg2: memref<1x128x32xf32, #tpu.memory_space<vmem>>, %arg3: memref<32x128xbf16, #tpu.memory_space<vmem>>, %arg4: memref<1x128xf32, #tpu.memory_space<vmem>>, %arg5: memref<1x128x256xbf16, #tpu.memory_space<vmem>>, %arg6: memref<1x256x32xbf16, #tpu.memory_space<vmem>>, %arg7: memref<1xf32, #tpu.memory_space<smem>>, %arg8: memref<1x128x32xf32, #tpu.memory_space<vmem>>, %arg9: memref<1x128x256xbf16, #tpu.memory_space<vmem>>) attributes {dimension_semantics = [#tpu.dimension_semantics<parallel>, #tpu.dimension_semantics<parallel>], iteration_bounds = array<i64: 2, 2>, scalar_prefetch = 0 : i64, scratch_operands = 0 : i64, tpu.core_type = #tpu.core_type<tc>, window_params = [{transform_indices = @transform_0, window_bounds = array<i64: 1, 128, 32>}, {pipeline_mode = #tpu.pipeline_mode<synchronous>, transform_indices = @transform_1, window_bounds = array<i64: 32, 128>}, {pipeline_mode = #tpu.pipeline_mode<synchronous>, transform_indices = @transform_2, window_bounds = array<i64: 1, 128>}, {transform_indices = @transform_3, window_bounds = array<i64: 1, 128, 256>}, {transform_indices = @transform_4, window_bounds = array<i64: 1, 256, 32>}, {transform_indices = @transform_5, window_bounds = array<i64: 1>}, {transform_indices = @transform_6, window_bounds = array<i64: 1, 128, 32>}, {transform_indices = @transform_7, window_bounds = array<i64: 1, 128, 256>}]} {
    %c0 = arith.constant 0 : index
    %c0_0 = arith.constant 0 : index
    %c0_1 = arith.constant 0 : index
    %0 = vector.load %arg2[%c0, %c0_0, %c0_1] : memref<1x128x32xf32, #tpu.memory_space<vmem>>, vector<1x128x32xf32>
    %1 = vector.shape_cast %0 : vector<1x128x32xf32> to vector<128x32xf32>
    %2 = arith.truncf %1 : vector<128x32xf32> to vector<128x32xbf16>
    %c0_2 = arith.constant 0 : index
    %c0_3 = arith.constant 0 : index
    %3 = vector.load %arg3[%c0_2, %c0_3] : memref<32x128xbf16, #tpu.memory_space<vmem>>, vector<32x128xbf16>
    %cst = arith.constant dense<0.000000e+00> : vector<128x128xf32>
    %4 = tpu.matmul %2, %3, %cst {dimension_numbers = #tpu.dot_dimension_numbers<[1], [0], [0], [1], [0, 0, 1, 1], [], []>} : vector<128x32xbf16>, vector<32x128xbf16>, vector<128x128xf32> -> vector<128x128xf32>
    %c0_4 = arith.constant 0 : index
    %c0_5 = arith.constant 0 : index
    %5 = vector.load %arg4[%c0_4, %c0_5] : memref<1x128xf32, #tpu.memory_space<vmem>>, vector<1x128xf32>
    %6 = vector.broadcast %5 : vector<1x128xf32> to vector<128x128xf32>
    %7 = arith.addf %4, %6 : vector<128x128xf32>
    %8 = arith.truncf %7 : vector<128x128xf32> to vector<128x128xbf16>
    %c0_6 = arith.constant 0 : index
    %c0_7 = arith.constant 0 : index
    %c0_8 = arith.constant 0 : index
    %9 = vector.load %arg5[%c0_6, %c0_7, %c0_8] : memref<1x128x256xbf16, #tpu.memory_space<vmem>>, vector<1x128x256xbf16>
    %10 = vector.shape_cast %9 : vector<1x128x256xbf16> to vector<128x256xbf16>
    %cst_9 = arith.constant dense<0.000000e+00> : vector<128x256xf32>
    %11 = tpu.matmul %8, %10, %cst_9 {dimension_numbers = #tpu.dot_dimension_numbers<[1], [0], [0], [1], [0, 0, 1, 1], [], []>} : vector<128x128xbf16>, vector<128x256xbf16>, vector<128x256xf32> -> vector<128x256xf32>
    %cst_10 = arith.constant dense<0xFF800000> : vector<128xf32>
    %12 = vector.multi_reduction <maximumf>, %11, %cst_10 [1] : vector<128x256xf32> to vector<128xf32>
    %13 = vector.shape_cast %12 : vector<128xf32> to vector<128x1xf32>
    %14 = vector.broadcast %13 : vector<128x1xf32> to vector<128x256xf32>
    %15 = arith.subf %11, %14 : vector<128x256xf32>
    %16 = math.exp %15 : vector<128x256xf32>
    %cst_11 = arith.constant dense<0.000000e+00> : vector<128xf32>
    %17 = vector.multi_reduction <add>, %16, %cst_11 [1] : vector<128x256xf32> to vector<128xf32>
    %18 = vector.shape_cast %17 : vector<128xf32> to vector<128x1xf32>
    %cst_12 = arith.constant 1.000000e+00 : f32
    %19 = vector.broadcast %cst_12 : f32 to vector<128x1xf32>
    %20 = arith.divf %19, %18 : vector<128x1xf32>
    %21 = vector.broadcast %20 : vector<128x1xf32> to vector<128x256xf32>
    %22 = arith.mulf %16, %21 : vector<128x256xf32>
    %23 = arith.truncf %22 : vector<128x256xf32> to vector<128x256xbf16>
    %c0_13 = arith.constant 0 : index
    %c0_14 = arith.constant 0 : index
    %c0_15 = arith.constant 0 : index
    %24 = vector.load %arg6[%c0_13, %c0_14, %c0_15] : memref<1x256x32xbf16, #tpu.memory_space<vmem>>, vector<1x256x32xbf16>
    %25 = vector.shape_cast %24 : vector<1x256x32xbf16> to vector<256x32xbf16>
    %cst_16 = arith.constant dense<0.000000e+00> : vector<128x32xf32>
    %26 = tpu.matmul %23, %25, %cst_16 {dimension_numbers = #tpu.dot_dimension_numbers<[1], [0], [0], [1], [0, 0, 1, 1], [], []>} : vector<128x256xbf16>, vector<256x32xbf16>, vector<128x32xf32> -> vector<128x32xf32>
    %c0_17 = arith.constant 0 : index
    %27 = memref.load %arg7[%c0_17] : memref<1xf32, #tpu.memory_space<smem>>
    %28 = vector.broadcast %27 : f32 to vector<128x32xf32>
    %29 = arith.mulf %28, %26 : vector<128x32xf32>
    %30 = arith.addf %29, %1 : vector<128x32xf32>
    %c0_18 = arith.constant 0 : index
    %c0_19 = arith.constant 0 : index
    %c0_20 = arith.constant 0 : index
    %31 = vector.load %arg8[%c0_18, %c0_19, %c0_20] : memref<1x128x32xf32, #tpu.memory_space<vmem>>, vector<1x128x32xf32>
    %32 = vector.shape_cast %31 : vector<1x128x32xf32> to vector<128x32xf32>
    %33 = vector.shape_cast %30 : vector<128x32xf32> to vector<1x128x32xf32>
    tpu.vector_store %arg8[%c0_18, %c0_19, %c0_20], %33 {strides = array<i32>} : memref<1x128x32xf32, #tpu.memory_space<vmem>>, vector<1x128x32xf32>,
    %34 = arith.truncf %22 : vector<128x256xf32> to vector<128x256xbf16>
    %c0_21 = arith.constant 0 : index
    %c0_22 = arith.constant 0 : index
    %c0_23 = arith.constant 0 : index
    %35 = vector.load %arg9[%c0_21, %c0_22, %c0_23] : memref<1x128x256xbf16, #tpu.memory_space<vmem>>, vector<1x128x256xbf16>
    %36 = vector.shape_cast %35 : vector<1x128x256xbf16> to vector<128x256xbf16>
    %37 = vector.shape_cast %34 : vector<128x256xbf16> to vector<1x128x256xbf16>
    tpu.vector_store %arg9[%c0_21, %c0_22, %c0_23], %37 {strides = array<i32>} : memref<1x128x256xbf16, #tpu.memory_space<vmem>>, vector<1x128x256xbf16>,
    return
  }
  func.func @transform_0(%arg0: i32, %arg1: i32) -> (i32, i32, i32) {
    %c0_i32 = arith.constant 0 : i32
    %c0_i32_0 = arith.constant 0 : i32
    return %arg0, %arg1, %c0_i32 : i32, i32, i32
  }
  func.func @transform_1(%arg0: i32, %arg1: i32) -> (i32, i32) {
    %c0_i32 = arith.constant 0 : i32
    %c0_i32_0 = arith.constant 0 : i32
    %c0_i32_1 = arith.constant 0 : i32
    return %c0_i32, %c0_i32_0 : i32, i32
  }
  func.func @transform_2(%arg0: i32, %arg1: i32) -> (i32, i32) {
    %c0_i32 = arith.constant 0 : i32
    %c0_i32_0 = arith.constant 0 : i32
    %c0_i32_1 = arith.constant 0 : i32
    return %c0_i32, %c0_i32_0 : i32, i32
  }
  func.func @transform_3(%arg0: i32, %arg1: i32) -> (i32, i32, i32) {
    %c0_i32 = arith.constant 0 : i32
    %c0_i32_0 = arith.constant 0 : i32
    %c0_i32_1 = arith.constant 0 : i32
    return %arg0, %c0_i32, %c0_i32_0 : i32, i32, i32
  }
  func.func @transform_4(%arg0: i32, %arg1: i32) -> (i32, i32, i32) {
    %c0_i32 = arith.constant 0 : i32
    %c0_i32_0 = arith.constant 0 : i32
    %c0_i32_1 = arith.constant 0 : i32
    return %arg0, %c0_i32, %c0_i32_0 : i32, i32, i32
  }
  func.func @transform_5(%arg0: i32, %arg1: i32) -> i32 {
    %c0_i32 = arith.constant 0 : i32
    %c0_i32_0 = arith.constant 0 : i32
    return %c0_i32 : i32
  }
  func.func @transform_6(%arg0: i32, %arg1: i32) -> (i32, i32, i32) {
    %c0_i32 = arith.constant 0 : i32
    %c0_i32_0 = arith.constant 0 : i32
    return %arg0, %arg1, %c0_i32 : i32, i32, i32
  }
  func.func @transform_7(%arg0: i32, %arg1: i32) -> (i32, i32, i32) {
    %c0_i32 = arith.constant 0 : i32
    %c0_i32_0 = arith.constant 0 : i32
    return %arg0, %arg1, %c0_i32 : i32, i32, i32
  }
}

</mosaic_0001>

<llo_original>
// kernel: self_attn_forward.1
$region0: #{self_attn_forward.1}
  #allocation0 [shape = 'u32[]', space=smem, size = 0x4, offset = 0x4, fixed_abs, tag = 'smem constant byte address 0x4 - core index']
  #allocation1 [shape = 'u32[144,128]{1,0:T(1,128)}', space=vmem, size = 0x12000, scoped, tag = 'internal scratch']
  #allocation2 [shape = 'f32[1]{0:T(128)S(6)}', space=smem, size = 0x200, scoped, tag = 'scoped memory for self_attn_forward.1']
  %s0 = inlined_call_operand.vmem [shape: f32[2,256,32], index: 0, kind: input, shape index: {}]
  %s1 = inlined_call_operand.vmem [shape: bf16[32,128], index: 1, kind: input, shape index: {}]
  %s2 = inlined_call_operand.vmem [shape: f32[1,128], index: 2, kind: input, shape index: {}]
  %s3 = inlined_call_operand.vmem [shape: bf16[2,128,256], index: 3, kind: input, shape index: {}]
  %s4 = inlined_call_operand.vmem [shape: bf16[2,256,32], index: 4, kind: input, shape index: {}]
  %s5 = inlined_call_operand.<no memory space> [shape: f32[1], index: 5, kind: input, shape index: {}]
  %s6 = inlined_call_operand.hbm [shape: f32[2,256,32], index: 6, kind: output, shape index: {0}]
  %s7 = inlined_call_operand.hbm [shape: bf16[2,256,256], index: 7, kind: output, shape index: {1}]
  %8 = xla_tuple %s6, %s7
  %s9 = sld [smem:[#allocation0]]
  $region65: #{self_attn_forward.1} parent=0
    _
  %s11 = ssub.s32 1, %s9
  %s12 = scalar_select 0, %s11, %s9
  %13 = sst [smem:[#allocation2]] %s5
  $region1: #{self_attn_forward.1} parent=0
    #allocation3 [shape = 'u8[131072]{0}', space=vmem, size = 0x20000, scoped, tag = 'output window, operand 0']
    #allocation4 [shape = 's32[2]{0}', space=sflag, size = 0x8, scoped, tag = 'scoped memory for self_attn_forward.1']
    #allocation5 [shape = 'u8[131072]{0}', space=vmem, size = 0x20000, scoped, tag = 'output window, operand 1']
    #allocation6 [shape = 's32[2]{0}', space=sflag, size = 0x8, scoped, tag = 'scoped memory for self_attn_forward.1']
    %14 = vsyncpa [#allocation4], 0
    %s15 = scalar_lea.sflag [#allocation4], 1
    %16 = vsyncpa %s15, 0
    %17 = vsyncpa [#allocation6], 0
    %s18 = scalar_lea.sflag [#allocation6], 1
    %19 = vsyncpa %s18, 0
    loop: start=0, step=1, limit=6
    $region2: #{self_attn_forward.1} parent=1 // loop_pre_header
      _
    $region3: #{self_attn_forward.1} parent=1 // loop_header
      %s21 = sphi 0, %s25
      %p22 = scmp.ge.s32.totalorder %s21, 6
      %s28 = sphi 0, %s40
      %s29 = sphi 0, %s36
      %s30 = sphi 0, %s28
      %s31 = sphi 0, %s29
      %s32 = sphi 0, %s30
      %s33 = sphi 0, %s31
      %s45 = sphi 0, %s47
      %s48 = sphi 0, %s45
      %s49 = sphi 0, %s48
      %s65 = sphi 0, %s49
      %s69 = sphi 0, %s69
      %s71 = sphi 0, %s69
      %s72 = sphi 0, %s71
      %s86 = sphi 0, %s72
      %s90 = sphi 0, %s90
      %s92 = sphi 0, %s90
      %s93 = sphi 0, %s92
      %s107 = sphi 0, %s93
      %s113 = sphi 0, %s115
      %s116 = sphi 0, %s113
      %s117 = sphi 0, %s116
      %s133 = sphi 0, %s117
      %s139 = sphi 0, %s141
      %s142 = sphi 0, %s139
      %s143 = sphi 0, %s142
      %s159 = sphi 0, %s143
      %s163 = sphi 0, %s163
      %s165 = sphi 0, %s163
      %s166 = sphi 0, %s165
      %s180 = sphi 0, %s166
      %s188 = sphi 0, %s190
      %s191 = sphi 0, %s188
      %s192 = sphi 0, %s191
      %s208 = sphi 0, %s192
      %s216 = sphi 0, %s218
      %s219 = sphi 0, %s216
      %s220 = sphi 0, %s219
      %s236 = sphi 0, %s220
    $region4: #{self_attn_forward.1} parent=1 // loop_header_branch
      %24 = sbr.rel (%p22) target = $region8
    $region5: #{self_attn_forward.1} parent=1 // loop_body
      %s26 = ssub.s32 %s21, 1
      %s27 = ssub.s32 %s21, 2
      %s34 = sadd.s32 1, %s29
      %p35 = scmp.ge.s32.totalorder %s34, 2
      %s36 = scalar_select %p35, 0, %s34
      %s37 = sadd.s32 1, %s28
      %s38 = scalar_select %p35, %s37, %s28
      %p39 = scmp.ge.s32.totalorder %s38, 2
      %s40 = scalar_select %p39, 0, %s38
      %s41 = ssub.s32 %s28, %s40
      %s42 = ssub.s32 %s29, %s36
      %s43 = sor.u32 %s41, %s42
      %p44 = scmp.eq.s32.totalorder %s43, 0
      %s46 = sadd.s32 %s45, 1
      %s47 = scalar_select %p44, %s45, %s46
      %p50 = pneg %p44
      %p51 = scmp.eq.s32.totalorder %s21, 3
      %p52 = por %p50, %p51
      %p53 = scmp.ne.s32.totalorder %s45, %s48
      %p54 = scmp.eq.s32.totalorder %s21, 0
      %p55 = por %p53, %p54
      %p56 = scmp.ne.s32.totalorder %s45, %s48
      %p57 = scmp.eq.s32.totalorder %s26, 3
      %p58 = por %p56, %p57
      %p59 = scmp.ne.s32.totalorder %s48, %s49
      %p60 = scmp.eq.s32.totalorder %s26, 0
      %p61 = por %p59, %p60
      %p62 = scmp.ne.s32.totalorder %s48, %s49
      %p63 = scmp.eq.s32.totalorder %s27, 3
      %p64 = por %p62, %p63
      %p66 = scmp.ne.s32.totalorder %s49, %s65
      %p67 = scmp.eq.s32.totalorder %s27, 0
      %p68 = por %p66, %p67
      %s70 = sadd.s32 %s69, 1
      %p73 = scmp.eq.s32.totalorder %s21, 3
      %p74 = scmp.ne.s32.totalorder %s69, %s71
      %p75 = scmp.eq.s32.totalorder %s21, 0
      %p76 = por %p74, %p75
      %p77 = scmp.ne.s32.totalorder %s69, %s71
      %p78 = scmp.eq.s32.totalorder %s26, 3
      %p79 = por %p77, %p78
      %p80 = scmp.ne.s32.totalorder %s71, %s72
      %p81 = scmp.eq.s32.totalorder %s26, 0
      %p82 = por %p80, %p81
      %p83 = scmp.ne.s32.totalorder %s71, %s72
      %p84 = scmp.eq.s32.totalorder %s27, 3
      %p85 = por %p83, %p84
      %p87 = scmp.ne.s32.totalorder %s72, %s86
      %p88 = scmp.eq.s32.totalorder %s27, 0
      %p89 = por %p87, %p88
      %s91 = sadd.s32 %s90, 1
      %p94 = scmp.eq.s32.totalorder %s21, 3
      %p95 = scmp.ne.s32.totalorder %s90, %s92
      %p96 = scmp.eq.s32.totalorder %s21, 0
      %p97 = por %p95, %p96
      %p98 = scmp.ne.s32.totalorder %s90, %s92
      %p99 = scmp.eq.s32.totalorder %s26, 3
      %p100 = por %p98, %p99
      %p101 = scmp.ne.s32.totalorder %s92, %s93
      %p102 = scmp.eq.s32.totalorder %s26, 0
      %p103 = por %p101, %p102
      %p104 = scmp.ne.s32.totalorder %s92, %s93
      %p105 = scmp.eq.s32.totalorder %s27, 3
      %p106 = por %p104, %p105
      %p108 = scmp.ne.s32.totalorder %s93, %s107
      %p109 = scmp.eq.s32.totalorder %s27, 0
      %p110 = por %p108, %p109
      %s111 = ssub.s32 %s28, %s40
      %p112 = scmp.eq.s32.totalorder %s111, 0
      %s114 = sadd.s32 %s113, 1
      %s115 = scalar_select %p112, %s113, %s114
      %p118 = pneg %p112
      %p119 = scmp.eq.s32.totalorder %s21, 3
      %p120 = por %p118, %p119
      %p121 = scmp.ne.s32.totalorder %s113, %s116
      %p122 = scmp.eq.s32.totalorder %s21, 0
      %p123 = por %p121, %p122
      %p124 = scmp.ne.s32.totalorder %s113, %s116
      %p125 = scmp.eq.s32.totalorder %s26, 3
      %p126 = por %p124, %p125
      %p127 = scmp.ne.s32.totalorder %s116, %s117
      %p128 = scmp.eq.s32.totalorder %s26, 0
      %p129 = por %p127, %p128
      %p130 = scmp.ne.s32.totalorder %s116, %s117
      %p131 = scmp.eq.s32.totalorder %s27, 3
      %p132 = por %p130, %p131
      %p134 = scmp.ne.s32.totalorder %s117, %s133
      %p135 = scmp.eq.s32.totalorder %s27, 0
      %p136 = por %p134, %p135
      %s137 = ssub.s32 %s28, %s40
      %p138 = scmp.eq.s32.totalorder %s137, 0
      %s140 = sadd.s32 %s139, 1
      %s141 = scalar_select %p138, %s139, %s140
      %p144 = pneg %p138
      %p145 = scmp.eq.s32.totalorder %s21, 3
      %p146 = por %p144, %p145
      %p147 = scmp.ne.s32.totalorder %s139, %s142
      %p148 = scmp.eq.s32.totalorder %s21, 0
      %p149 = por %p147, %p148
      %p150 = scmp.ne.s32.totalorder %s139, %s142
      %p151 = scmp.eq.s32.totalorder %s26, 3
      %p152 = por %p150, %p151
      %p153 = scmp.ne.s32.totalorder %s142, %s143
      %p154 = scmp.eq.s32.totalorder %s26, 0
      %p155 = por %p153, %p154
      %p156 = scmp.ne.s32.totalorder %s142, %s143
      %p157 = scmp.eq.s32.totalorder %s27, 3
      %p158 = por %p156, %p157
      %p160 = scmp.ne.s32.totalorder %s143, %s159
      %p161 = scmp.eq.s32.totalorder %s27, 0
      %p162 = por %p160, %p161
      %s164 = sadd.s32 %s163, 1
      %p167 = scmp.eq.s32.totalorder %s21, 3
      %p168 = scmp.ne.s32.totalorder %s163, %s165
      %p169 = scmp.eq.s32.totalorder %s21, 0
      %p170 = por %p168, %p169
      %p171 = scmp.ne.s32.totalorder %s163, %s165
      %p172 = scmp.eq.s32.totalorder %s26, 3
      %p173 = por %p171, %p172
      %p174 = scmp.ne.s32.totalorder %s165, %s166
      %p175 = scmp.eq.s32.totalorder %s26, 0
      %p176 = por %p174, %p175
      %p177 = scmp.ne.s32.totalorder %s165, %s166
      %p178 = scmp.eq.s32.totalorder %s27, 3
      %p179 = por %p177, %p178
      %p181 = scmp.ne.s32.totalorder %s166, %s180
      %p182 = scmp.eq.s32.totalorder %s27, 0
      %p183 = por %p181, %p182
      %s184 = ssub.s32 %s28, %s40
      %s185 = ssub.s32 %s29, %s36
      %s186 = sor.u32 %s184, %s185
      %p187 = scmp.eq.s32.totalorder %s186, 0
      %s189 = sadd.s32 %s188, 1
      %s190 = scalar_select %p187, %s188, %s189
      %p193 = pneg %p187
      %p194 = scmp.eq.s32.totalorder %s21, 3
      %p195 = por %p193, %p194
      %p196 = scmp.ne.s32.totalorder %s188, %s191
      %p197 = scmp.eq.s32.totalorder %s21, 0
      %p198 = por %p196, %p197
      %p199 = scmp.ne.s32.totalorder %s188, %s191
      %p200 = scmp.eq.s32.totalorder %s26, 3
      %p201 = por %p199, %p200
      %p202 = scmp.ne.s32.totalorder %s191, %s192
      %p203 = scmp.eq.s32.totalorder %s26, 0
      %p204 = por %p202, %p203
      %p205 = scmp.ne.s32.totalorder %s191, %s192
      %p206 = scmp.eq.s32.totalorder %s27, 3
      %p207 = por %p205, %p206
      %p209 = scmp.ne.s32.totalorder %s192, %s208
      %p210 = scmp.eq.s32.totalorder %s27, 0
      %p211 = por %p209, %p210
      %s212 = ssub.s32 %s28, %s40
      %s213 = ssub.s32 %s29, %s36
      %s214 = sor.u32 %s212, %s213
      %p215 = scmp.eq.s32.totalorder %s214, 0
      %s217 = sadd.s32 %s216, 1
      %s218 = scalar_select %p215, %s216, %s217
      %p221 = pneg %p215
      %p222 = scmp.eq.s32.totalorder %s21, 3
      %p223 = por %p221, %p222
      %p224 = scmp.ne.s32.totalorder %s216, %s219
      %p225 = scmp.eq.s32.totalorder %s21, 0
      %p226 = por %p224, %p225
      %p227 = scmp.ne.s32.totalorder %s216, %s219
      %p228 = scmp.eq.s32.totalorder %s26, 3
      %p229 = por %p227, %p228
      %p230 = scmp.ne.s32.totalorder %s219, %s220
      %p231 = scmp.eq.s32.totalorder %s26, 0
      %p232 = por %p230, %p231
      %p233 = scmp.ne.s32.totalorder %s219, %s220
      %p234 = scmp.eq.s32.totalorder %s27, 3
      %p235 = por %p233, %p234
      %p237 = scmp.ne.s32.totalorder %s220, %s236
      %p238 = scmp.eq.s32.totalorder %s27, 0
      %p239 = por %p237, %p238
      %p240 = scmp.le.s32.totalorder 1, %s21
      %p241 = scmp.lt.s32.totalorder %s21, 5
      %p242 = pnand %p240, %p241
      %p243 = pneg %p242
      // Predicated region
      $region9: #{self_attn_forward.1} parent=5 // pred_check
        _
      $region10: #{self_attn_forward.1} parent=5 // pred_check_branch
        %245 = sbr.rel (%p242) target = $region12
      $region11: #{self_attn_forward.1} parent=5 // pred_region
        %s246 = ssub.s32 %s21, 1
        // Predicated region
        $region13: #{self_attn_forward.1} parent=11 // pred_check
          %p247 = pneg %p82
        $region14: #{self_attn_forward.1} parent=11 // pred_check_branch
          %249 = sbr.rel (%p247) target = $region16
        $region15: #{self_attn_forward.1} parent=11 // pred_region
          _
        $region16: #{self_attn_forward.1} parent=11 // pred_fallthru
          _
        // Predicated region
        $region17: #{self_attn_forward.1} parent=11 // pred_check
          %p250 = pneg %p103
        $region18: #{self_attn_forward.1} parent=11 // pred_check_branch
          %252 = sbr.rel (%p250) target = $region20
        $region19: #{self_attn_forward.1} parent=11 // pred_region
          _
        $region20: #{self_attn_forward.1} parent=11 // pred_fallthru
          _
        // Predicated region
        $region21: #{self_attn_forward.1} parent=11 // pred_check
          %p253 = pneg %p176
        $region22: #{self_attn_forward.1} parent=11 // pred_check_branch
          %255 = sbr.rel (%p253) target = $region24
        $region23: #{self_attn_forward.1} parent=11 // pred_region
          _
        $region24: #{self_attn_forward.1} parent=11 // pred_fallthru
          _
      $region12: #{self_attn_forward.1} parent=5 // pred_fallthru
        _
      %p256 = scmp.lt.s32.totalorder %s21, 4
      // Predicated region
      $region25: #{self_attn_forward.1} parent=5 // pred_check
        %p257 = pneg %p256
      $region26: #{self_attn_forward.1} parent=5 // pred_check_branch
        %259 = sbr.rel (%p257) target = $region28
      $region27: #{self_attn_forward.1} parent=5 // pred_region
        // Predicated region
        $region29: #{self_attn_forward.1} parent=27 // pred_check
          %p260 = pneg %p55
        $region30: #{self_attn_forward.1} parent=27 // pred_check_branch
          %262 = sbr.rel (%p260) target = $region32
        $region31: #{self_attn_forward.1} parent=27 // pred_region
          %s263 = smul.u32 16, %s29
          %p264 = scmp.lt.s32.totalorder %s28, 1
          %s265 = scalar_select %p264, %s28, 1
          %p266 = scmp.lt.s32.totalorder %s263, 31
          %s267 = scalar_select %p266, %s263, 31
          %s268 = smul.addr %s265, 32
          %s269 = sadd.s32 %s267, %s268
          %s270 = smul.addr %s269, 8
          %s271 = scalar_lea.vmem %s0, %s270
          %s272 = smul.u32 16, %s29
        $region32: #{self_attn_forward.1} parent=27 // pred_fallthru
          _
        // Predicated region
        $region33: #{self_attn_forward.1} parent=27 // pred_check
          %p273 = pneg %p123
        $region34: #{self_attn_forward.1} parent=27 // pred_check_branch
          %275 = sbr.rel (%p273) target = $region36
        $region35: #{self_attn_forward.1} parent=27 // pred_region
          %p276 = scmp.lt.s32.totalorder %s28, 1
          %s277 = scalar_select %p276, %s28, 1
          %s278 = smul.addr %s277, 32
          %s279 = smul.addr %s278, 4
          %s280 = scalar_lea.vmem %s3, %s279
        $region36: #{self_attn_forward.1} parent=27 // pred_fallthru
          _
        // Predicated region
        $region37: #{self_attn_forward.1} parent=27 // pred_check
          %p281 = pneg %p149
        $region38: #{self_attn_forward.1} parent=27 // pred_check_branch
          %283 = sbr.rel (%p281) target = $region40
        $region39: #{self_attn_forward.1} parent=27 // pred_region
          %p284 = scmp.lt.s32.totalorder %s28, 1
          %s285 = scalar_select %p284, %s28, 1
          %s286 = smul.addr %s285, 32
          %s287 = smul.addr %s286, 4
          %s288 = scalar_lea.vmem %s4, %s287
        $region40: #{self_attn_forward.1} parent=27 // pred_fallthru
          _
      $region28: #{self_attn_forward.1} parent=5 // pred_fallthru
        _
      %p289 = scmp.le.s32.totalorder 1, %s21
      %p290 = scmp.lt.s32.totalorder %s21, 5
      %p291 = pnand %p289, %p290
      %p292 = pneg %p291
      // Predicated region
      $region41: #{self_attn_forward.1} parent=5 // pred_check
        _
      $region42: #{self_attn_forward.1} parent=5 // pred_check_branch
        %294 = sbr.rel (%p291) target = $region44
      $region43: #{self_attn_forward.1} parent=5 // pred_region
        %s295 = ssub.s32 %s21, 1
        %s296 = smul.u32 16, %s31
        %p297 = scmp.lt.s32.totalorder %s30, 1
        %s298 = scalar_select %p297, %s30, 1
        %p299 = scmp.lt.s32.totalorder %s296, 31
        %s300 = scalar_select %p299, %s296, 31
        %s301 = smul.addr %s298, 32
        %s302 = sadd.s32 %s300, %s301
        %s303 = smul.addr %s302, 8
        %s304 = scalar_lea.vmem %s0, %s303
        %p305 = pneg %p61
        %p306 = pneg %p58
        %p307 = pneg %p82
        %p308 = pneg %p79
        %p309 = pneg %p103
        %p310 = pneg %p100
        %p311 = scmp.lt.s32.totalorder %s30, 1
        %s312 = scalar_select %p311, %s30, 1
        %s313 = smul.addr %s312, 32
        %s314 = smul.addr %s313, 4
        %s315 = scalar_lea.vmem %s3, %s314
        %p316 = pneg %p129
        %p317 = pneg %p126
        %p318 = scmp.lt.s32.totalorder %s30, 1
        %s319 = scalar_select %p318, %s30, 1
        %s320 = smul.addr %s319, 32
        %s321 = smul.addr %s320, 4
        %s322 = scalar_lea.vmem %s4, %s321
        %p323 = pneg %p155
        %p324 = pneg %p152
        %p325 = pneg %p176
        %p326 = pneg %p173
        %p327 = pneg %p204
        %p328 = pneg %p201
        %s329 = sand.u32 %s191, 1
        %s330 = scalar_lea.sflag [#allocation4], %s329
        %s331 = sand.u32 %s191, 1
        %s332 = smul.addr %s331, 128
        %s333 = scalar_lea.vmem [#allocation3], %s332
        %p334 = pneg %p232
        %p335 = pneg %p229
        %s336 = sand.u32 %s219, 1
        %s337 = scalar_lea.sflag [#allocation6], %s336
        %s338 = sand.u32 %s219, 1
        %s339 = smul.addr %s338, 128
        %s340 = scalar_lea.vmem [#allocation5], %s339
        %s341 = smul.u32 16, %s31
        %p342 = scmp.lt.s32.totalorder %s30, 1
        %s343 = scalar_select %p342, %s30, 1
        %p344 = scmp.lt.s32.totalorder %s341, 31
        %s345 = scalar_select %p344, %s341, 31
        %s346 = smul.addr %s343, 32
        %s347 = sadd.s32 %s345, %s346
        %s348 = smul.addr %s347, 8
        %s349 = scalar_lea.vmem %s0, %s348
        %s350 = smul.u32 16, %s31
        %p351 = scmp.lt.s32.totalorder %s30, 1
        %s352 = scalar_select %p351, %s30, 1
        %s353 = smul.addr %s352, 32
        %s354 = smul.addr %s353, 4
        %s355 = scalar_lea.vmem %s3, %s354
        %p356 = scmp.lt.s32.totalorder %s30, 1
        %s357 = scalar_select %p356, %s30, 1
        %s358 = smul.addr %s357, 32
        %s359 = smul.addr %s358, 4
        %s360 = scalar_lea.vmem %s4, %s359
        %s361 = smul.u32 16, %s31
        %s362 = smul.u32 16, %s31
        %v364 = vld [vmem:[%s349] sm:$0xff]
        %v365 = vld [vmem:[%s349 + $0x8] sm:$0xff]
        %v366 = vld [vmem:[%s349 + $0x10] sm:$0xff]
        %v367 = vld [vmem:[%s349 + $0x18] sm:$0xff]
        %v368 = vld [vmem:[%s349 + $0x20] sm:$0xff]
        %v369 = vld [vmem:[%s349 + $0x28] sm:$0xff]
        %v370 = vld [vmem:[%s349 + $0x30] sm:$0xff]
        %v371 = vld [vmem:[%s349 + $0x38] sm:$0xff]
        %v372 = vld [vmem:[%s349 + $0x40] sm:$0xff]
        %v373 = vld [vmem:[%s349 + $0x48] sm:$0xff]
        %v374 = vld [vmem:[%s349 + $0x50] sm:$0xff]
        %v375 = vld [vmem:[%s349 + $0x58] sm:$0xff]
        %v376 = vld [vmem:[%s349 + $0x60] sm:$0xff]
        %v377 = vld [vmem:[%s349 + $0x68] sm:$0xff]
        %v378 = vld [vmem:[%s349 + $0x70] sm:$0xff]
        %v379 = vld [vmem:[%s349 + $0x78] sm:$0xff]
        %v380 = vpack.c.bf16 %v365, %v364
        %v381 = vpack.c.bf16 %v367, %v366
        %v382 = vpack.c.bf16 %v369, %v368
        %v383 = vpack.c.bf16 %v371, %v370
        %v384 = vpack.c.bf16 %v373, %v372
        %v385 = vpack.c.bf16 %v375, %v374
        %v386 = vpack.c.bf16 %v377, %v376
        %v387 = vpack.c.bf16 %v379, %v378
        %v388 = vld [vmem:[%s1] sm:$0xf]
        %v389 = vld [vmem:[%s1 + $0x4] sm:$0xf]
        %v390 = vld [vmem:[%s1 + $0x8] sm:$0xf]
        %v391 = vld [vmem:[%s1 + $0xc] sm:$0xf]
        %v392 = vld [vmem:[%s2] sm:$0x1]
        %v394 = vlaneseq
        %v395 = vshrl.u32 %v394, 7
        %v396 = vsub.s32 0, %v395
        %v397 = vrot.slane %v392, %v396
        %v403 = vunpack.c.l.b16 %v388
        %v404 = vunpack.c.l.b16 %v389
        %v405 = vunpack.c.l.b16 %v390
        %v406 = vunpack.c.l.b16 %v391
        %v407 = vpack.c.b16 %v404, %v403
        %v408 = vpack.c.b16 %v406, %v405
        %vm411 = vcmask 261120
        %v413 = vsel %vm411, %v380, 0
        %v416 = vsel %vm411, %v381, 0
        %v419 = vsel %vm411, %v382, 0
        %v422 = vsel %vm411, %v383, 0
        %v425 = vsel %vm411, %v384, 0
        %v428 = vsel %vm411, %v385, 0
        %v431 = vsel %vm411, %v386, 0
        %v434 = vsel %vm411, %v387, 0
        %436 = vmatprep.subr.bf16.mxu0 0
        %437 = vmatpush1.bf16.msra.mxu0 %v407
        %438 = vmatprep.subr.bf16.mxu0 0
        %439 = vmatpush1.bf16.msra.mxu0 %v408
        %440 = vmatprep.subr.bf16.mxu0 0
        %441 = vmatpush1.bf16.msra.mxu0 0
        %442 = vmatprep.subr.bf16.mxu0 0
        %443 = vmatpush1.bf16.msra.mxu0 0
        %444 = vmatprep.subr.bf16.mxu0 0
        %445 = vmatpush1.bf16.msra.mxu0 0
        %446 = vmatprep.subr.bf16.mxu0 0
        %447 = vmatpush1.bf16.msra.mxu0 0
        %448 = vmatprep.subr.bf16.mxu0 0
        %449 = vmatpush1.bf16.msra.mxu0 0
        %450 = vmatprep.subr.bf16.mxu0 0
        %451 = vmatpush1.bf16.msra.mxu0 0
        %452 = vmatprep.subr.bf16.mxu0 0
        %453 = vmatpush1.bf16.msra.mxu0 0
        %454 = vmatprep.subr.bf16.mxu0 0
        %455 = vmatpush1.bf16.msra.mxu0 0
        %456 = vmatprep.subr.bf16.mxu0 0
        %457 = vmatpush1.bf16.msra.mxu0 0
        %458 = vmatprep.subr.bf16.mxu0 0
        %459 = vmatpush1.bf16.msra.mxu0 0
        %460 = vmatprep.subr.bf16.mxu0 0
        %461 = vmatpush1.bf16.msra.mxu0 0
        %462 = vmatprep.subr.bf16.mxu0 0
        %463 = vmatpush1.bf16.msra.mxu0 0
        %464 = vmatprep.subr.bf16.mxu0 0
        %465 = vmatpush1.bf16.msra.mxu0 0
        %466 = vmatprep.subr.bf16.mxu0 0
        %467 = vmatpush1.bf16.msra.mxu0 0
        %468 = vmatprep.mubr.bf16.mxu0 0
        %469 = vmatmul.mubr.bf16.gmra.mrb[0].mxu0 %v413
        %v470 = vpop.f32.mrb[0].mxu0
        %v471 = vadd.f32 %v397, %v470
        %v472 = vpop.f32.mrb[0].mxu0
        %v473 = vpop.f32.mrb[0].mxu0
        %v474 = vadd.f32 %v397, %v473
        %v475 = vpop.f32.mrb[0].mxu0
        %476 = vmatprep.mubr.bf16.mxu0 0
        %477 = vmatmul.mubr.bf16.gmra.mrb[0].mxu0 %v416
        %v478 = vpop.f32.mrb[0].mxu0
        %v479 = vadd.f32 %v397, %v478
        %v480 = vpop.f32.mrb[0].mxu0
        %v481 = vpop.f32.mrb[0].mxu0
        %v482 = vadd.f32 %v397, %v481
        %v483 = vpop.f32.mrb[0].mxu0
        %484 = vmatprep.mubr.bf16.mxu0 0
        %485 = vmatmul.mubr.bf16.gmra.mrb[0].mxu0 %v419
        %v486 = vpop.f32.mrb[0].mxu0
        %v487 = vadd.f32 %v397, %v486
        %v488 = vpop.f32.mrb[0].mxu0
        %v489 = vpop.f32.mrb[0].mxu0
        %v490 = vadd.f32 %v397, %v489
        %v491 = vpop.f32.mrb[0].mxu0
        %492 = vmatprep.mubr.bf16.mxu0 0
        %493 = vmatmul.mubr.bf16.gmra.mrb[0].mxu0 %v422
        %v494 = vpop.f32.mrb[0].mxu0
        %v495 = vadd.f32 %v397, %v494
        %v496 = vpop.f32.mrb[0].mxu0
        %v497 = vpop.f32.mrb[0].mxu0
        %v498 = vadd.f32 %v397, %v497
        %v499 = vpop.f32.mrb[0].mxu0
        %500 = vmatprep.mubr.bf16.mxu0 0
        %501 = vmatmul.mubr.bf16.gmra.mrb[0].mxu0 %v425
        %v502 = vpop.f32.mrb[0].mxu0
        %v503 = vadd.f32 %v397, %v502
        %v504 = vpop.f32.mrb[0].mxu0
        %v505 = vpop.f32.mrb[0].mxu0
        %v506 = vadd.f32 %v397, %v505
        %v507 = vpop.f32.mrb[0].mxu0
        %508 = vmatprep.mubr.bf16.mxu0 0
        %509 = vmatmul.mubr.bf16.gmra.mrb[0].mxu0 %v428
        %v510 = vpop.f32.mrb[0].mxu0
        %v511 = vadd.f32 %v397, %v510
        %v512 = vpop.f32.mrb[0].mxu0
        %v513 = vpop.f32.mrb[0].mxu0
        %v514 = vadd.f32 %v397, %v513
        %v515 = vpop.f32.mrb[0].mxu0
        %516 = vmatprep.mubr.bf16.mxu0 0
        %517 = vmatmul.mubr.bf16.gmra.mrb[0].mxu0 %v431
        %v518 = vpop.f32.mrb[0].mxu0
        %v519 = vadd.f32 %v397, %v518
        %v520 = vpop.f32.mrb[0].mxu0
        %v521 = vpop.f32.mrb[0].mxu0
        %v522 = vadd.f32 %v397, %v521
        %v523 = vpop.f32.mrb[0].mxu0
        %524 = vmatprep.mubr.bf16.mxu0 0
        %525 = vmatmul.mubr.bf16.gmra.mrb[0].mxu0 %v434
        %v526 = vpop.f32.mrb[0].mxu0
        %v527 = vadd.f32 %v397, %v526
        %v528 = vpop.f32.mrb[0].mxu0
        %v529 = vpop.f32.mrb[0].mxu0
        %v530 = vadd.f32 %v397, %v529
        %v531 = vpop.f32.mrb[0].mxu0
        %532 = vdwg.mxu0
        %v533 = vpack.c.bf16 %v474, %v471
        %v534 = vpack.c.bf16 %v482, %v479
        %v535 = vpack.c.bf16 %v490, %v487
        %v536 = vpack.c.bf16 %v498, %v495
        %v537 = vpack.c.bf16 %v506, %v503
        %v538 = vpack.c.bf16 %v514, %v511
        %v539 = vpack.c.bf16 %v522, %v519
        %v540 = vpack.c.bf16 %v530, %v527
        %v541 = vld [vmem:[%s355] sm:$0xff]
        %v542 = vld [vmem:[%s355 + $0x8] sm:$0xff]
        %v543 = vld [vmem:[%s355 + $0x10] sm:$0xff]
        %v544 = vld [vmem:[%s355 + $0x18] sm:$0xff]
        %v545 = vld [vmem:[%s355 + $0x20] sm:$0xff]
        %v546 = vld [vmem:[%s355 + $0x28] sm:$0xff]
        %v547 = vld [vmem:[%s355 + $0x30] sm:$0xff]
        %v548 = vld [vmem:[%s355 + $0x38] sm:$0xff]
        %v549 = vld [vmem:[%s355 + $0x40] sm:$0xff]
        %v550 = vld [vmem:[%s355 + $0x48] sm:$0xff]
        %v551 = vld [vmem:[%s355 + $0x50] sm:$0xff]
        %v552 = vld [vmem:[%s355 + $0x58] sm:$0xff]
        %v553 = vld [vmem:[%s355 + $0x60] sm:$0xff]
        %v554 = vld [vmem:[%s355 + $0x68] sm:$0xff]
        %v555 = vld [vmem:[%s355 + $0x70] sm:$0xff]
        %v556 = vld [vmem:[%s355 + $0x78] sm:$0xff]
        %v573 = vunpack.c.l.b16 %v541
        %v574 = vunpack.c.h.b16 %v541
        %v575 = vunpack.c.l.b16 %v542
        %v576 = vunpack.c.h.b16 %v542
        %v577 = vunpack.c.l.b16 %v543
        %v578 = vunpack.c.h.b16 %v543
        %v579 = vunpack.c.l.b16 %v544
        %v580 = vunpack.c.h.b16 %v544
        %v581 = vunpack.c.l.b16 %v545
        %v582 = vunpack.c.h.b16 %v545
        %v583 = vunpack.c.l.b16 %v546
        %v584 = vunpack.c.h.b16 %v546
        %v585 = vunpack.c.l.b16 %v547
        %v586 = vunpack.c.h.b16 %v547
        %v587 = vunpack.c.l.b16 %v548
        %v588 = vunpack.c.h.b16 %v548
        %v589 = vunpack.c.l.b16 %v549
        %v590 = vunpack.c.h.b16 %v549
        %v591 = vunpack.c.l.b16 %v550
        %v592 = vunpack.c.h.b16 %v550
        %v593 = vunpack.c.l.b16 %v551
        %v594 = vunpack.c.h.b16 %v551
        %v595 = vunpack.c.l.b16 %v552
        %v596 = vunpack.c.h.b16 %v552
        %v597 = vunpack.c.l.b16 %v553
        %v598 = vunpack.c.h.b16 %v553
        %v599 = vunpack.c.l.b16 %v554
        %v600 = vunpack.c.h.b16 %v554
        %v601 = vunpack.c.l.b16 %v555
        %v602 = vunpack.c.h.b16 %v555
        %v603 = vunpack.c.l.b16 %v556
        %v604 = vunpack.c.h.b16 %v556
        %v605 = vpack.c.b16 %v575, %v573
        %v606 = vpack.c.b16 %v576, %v574
        %v607 = vpack.c.b16 %v579, %v577
        %v608 = vpack.c.b16 %v580, %v578
        %v609 = vpack.c.b16 %v583, %v581
        %v610 = vpack.c.b16 %v584, %v582
        %v611 = vpack.c.b16 %v587, %v585
        %v612 = vpack.c.b16 %v588, %v586
        %v613 = vpack.c.b16 %v591, %v589
        %v614 = vpack.c.b16 %v592, %v590
        %v615 = vpack.c.b16 %v595, %v593
        %v616 = vpack.c.b16 %v596, %v594
        %v617 = vpack.c.b16 %v599, %v597
        %v618 = vpack.c.b16 %v600, %v598
        %v619 = vpack.c.b16 %v603, %v601
        %v620 = vpack.c.b16 %v604, %v602
        %637 = vmatprep.subr.bf16.mxu0 %v606
        %638 = vmatpush1.bf16.msra.mxu0 %v605
        %639 = vmatprep.subr.bf16.mxu0 %v608
        %640 = vmatpush1.bf16.msra.mxu0 %v607
        %641 = vmatprep.subr.bf16.mxu0 %v610
        %642 = vmatpush1.bf16.msra.mxu0 %v609
        %643 = vmatprep.subr.bf16.mxu0 %v612
        %644 = vmatpush1.bf16.msra.mxu0 %v611
        %645 = vmatprep.subr.bf16.mxu0 %v614
        %646 = vmatpush1.bf16.msra.mxu0 %v613
        %647 = vmatprep.subr.bf16.mxu0 %v616
        %648 = vmatpush1.bf16.msra.mxu0 %v615
        %649 = vmatprep.subr.bf16.mxu0 %v618
        %650 = vmatpush1.bf16.msra.mxu0 %v617
        %651 = vmatprep.subr.bf16.mxu0 %v620
        %652 = vmatpush1.bf16.msra.mxu0 %v619
        %653 = vmatprep.subr.bf16.mxu0 0
        %654 = vmatpush1.bf16.msra.mxu0 0
        %655 = vmatprep.subr.bf16.mxu0 0
        %656 = vmatpush1.bf16.msra.mxu0 0
        %657 = vmatprep.subr.bf16.mxu0 0
        %658 = vmatpush1.bf16.msra.mxu0 0
        %659 = vmatprep.subr.bf16.mxu0 0
        %660 = vmatpush1.bf16.msra.mxu0 0
        %661 = vmatprep.subr.bf16.mxu0 0
        %662 = vmatpush1.bf16.msra.mxu0 0
        %663 = vmatprep.subr.bf16.mxu0 0
        %664 = vmatpush1.bf16.msra.mxu0 0
        %665 = vmatprep.subr.bf16.mxu0 0
        %666 = vmatpush1.bf16.msra.mxu0 0
        %667 = vmatprep.subr.bf16.mxu0 0
        %668 = vmatpush1.bf16.msra.mxu0 0
        %669 = vmatprep.mubr.bf16.mxu0 0
        %670 = vmatmul.mubr.bf16.gmra.mrb[0].mxu0 %v533
        %v671 = vpop.f32.mrb[0].mxu0
        %v672 = vadd.f32 0.0, %v671
        %v673 = vpop.f32.mrb[0].mxu0
        %v674 = vadd.f32 0.0, %v673
        %v675 = vpop.f32.mrb[0].mxu0
        %v676 = vadd.f32 0.0, %v675
        %v677 = vpop.f32.mrb[0].mxu0
        %v678 = vadd.f32 0.0, %v677
        %679 = vmatprep.mubr.bf16.mxu0 0
        %680 = vmatmul.mubr.bf16.gmra.mrb[0].mxu0 %v534
        %v681 = vpop.f32.mrb[0].mxu0
        %v682 = vadd.f32 0.0, %v681
        %v683 = vpop.f32.mrb[0].mxu0
        %v684 = vadd.f32 0.0, %v683
        %v685 = vpop.f32.mrb[0].mxu0
        %v686 = vadd.f32 0.0, %v685
        %v687 = vpop.f32.mrb[0].mxu0
        %v688 = vadd.f32 0.0, %v687
        %689 = vmatprep.mubr.bf16.mxu0 0
        %690 = vmatmul.mubr.bf16.gmra.mrb[0].mxu0 %v535
        %v691 = vpop.f32.mrb[0].mxu0
        %v692 = vadd.f32 0.0, %v691
        %v693 = vpop.f32.mrb[0].mxu0
        %v694 = vadd.f32 0.0, %v693
        %v695 = vpop.f32.mrb[0].mxu0
        %v696 = vadd.f32 0.0, %v695
        %v697 = vpop.f32.mrb[0].mxu0
        %v698 = vadd.f32 0.0, %v697
        %699 = vmatprep.mubr.bf16.mxu0 0
        %700 = vmatmul.mubr.bf16.gmra.mrb[0].mxu0 %v536
        %v701 = vpop.f32.mrb[0].mxu0
        %v702 = vadd.f32 0.0, %v701
        %v703 = vpop.f32.mrb[0].mxu0
        %v704 = vadd.f32 0.0, %v703
        %v705 = vpop.f32.mrb[0].mxu0
        %v706 = vadd.f32 0.0, %v705
        %v707 = vpop.f32.mrb[0].mxu0
        %v708 = vadd.f32 0.0, %v707
        %709 = vmatprep.mubr.bf16.mxu0 0
        %710 = vmatmul.mubr.bf16.gmra.mrb[0].mxu0 %v537
        %v711 = vpop.f32.mrb[0].mxu0
        %v712 = vadd.f32 0.0, %v711
        %v713 = vpop.f32.mrb[0].mxu0
        %v714 = vadd.f32 0.0, %v713
        %v715 = vpop.f32.mrb[0].mxu0
        %v716 = vadd.f32 0.0, %v715
        %v717 = vpop.f32.mrb[0].mxu0
        %v718 = vadd.f32 0.0, %v717
        %719 = vmatprep.mubr.bf16.mxu0 0
        %720 = vmatmul.mubr.bf16.gmra.mrb[0].mxu0 %v538
        %v721 = vpop.f32.mrb[0].mxu0
        %v722 = vadd.f32 0.0, %v721
        %v723 = vpop.f32.mrb[0].mxu0
        %v724 = vadd.f32 0.0, %v723
        %v725 = vpop.f32.mrb[0].mxu0
        %v726 = vadd.f32 0.0, %v725
        %v727 = vpop.f32.mrb[0].mxu0
        %v728 = vadd.f32 0.0, %v727
        %729 = vmatprep.mubr.bf16.mxu0 0
        %730 = vmatmul.mubr.bf16.gmra.mrb[0].mxu0 %v539
        %v731 = vpop.f32.mrb[0].mxu0
        %v732 = vadd.f32 0.0, %v731
        %v733 = vpop.f32.mrb[0].mxu0
        %v734 = vadd.f32 0.0, %v733
        %v735 = vpop.f32.mrb[0].mxu0
        %v736 = vadd.f32 0.0, %v735
        %v737 = vpop.f32.mrb[0].mxu0
        %v738 = vadd.f32 0.0, %v737
        %739 = vmatprep.mubr.bf16.mxu0 0
        %740 = vmatmul.mubr.bf16.gmra.mrb[0].mxu0 %v540
        %v741 = vpop.f32.mrb[0].mxu0
        %v742 = vadd.f32 0.0, %v741
        %v743 = vpop.f32.mrb[0].mxu0
        %v744 = vadd.f32 0.0, %v743
        %v745 = vpop.f32.mrb[0].mxu0
        %v746 = vadd.f32 0.0, %v745
        %v747 = vpop.f32.mrb[0].mxu0
        %v748 = vadd.f32 0.0, %v747
        %749 = vdwg.mxu0
        %v750 = vmax.f32 %v672, %v674
        %751 = vmax.xlane.f32.xlu0 %v750
        %v752 = vpop.xlane.xlu0 %751
        %v753 = vmax.f32 %v676, %v678
        %754 = vmax.xlane.f32.xlu0 %v753
        %v755 = vpop.xlane.xlu0 %754
        %v756 = vmax.f32 %v682, %v684
        %757 = vmax.xlane.f32.xlu0 %v756
        %v758 = vpop.xlane.xlu0 %757
        %v759 = vmax.f32 %v686, %v688
        %760 = vmax.xlane.f32.xlu0 %v759
        %v761 = vpop.xlane.xlu0 %760
        %v762 = vmax.f32 %v692, %v694
        %763 = vmax.xlane.f32.xlu0 %v762
        %v764 = vpop.xlane.xlu0 %763
        %v765 = vmax.f32 %v696, %v698
        %766 = vmax.xlane.f32.xlu0 %v765
        %v767 = vpop.xlane.xlu0 %766
        %v768 = vmax.f32 %v702, %v704
        %769 = vmax.xlane.f32.xlu0 %v768
        %v770 = vpop.xlane.xlu0 %769
        %v771 = vmax.f32 %v706, %v708
        %772 = vmax.xlane.f32.xlu0 %v771
        %v773 = vpop.xlane.xlu0 %772
        %v774 = vmax.f32 %v712, %v714
        %775 = vmax.xlane.f32.xlu0 %v774
        %v776 = vpop.xlane.xlu0 %775
        %v777 = vmax.f32 %v716, %v718
        %778 = vmax.xlane.f32.xlu0 %v777
        %v779 = vpop.xlane.xlu0 %778
        %v780 = vmax.f32 %v722, %v724
        %781 = vmax.xlane.f32.xlu0 %v780
        %v782 = vpop.xlane.xlu0 %781
        %v783 = vmax.f32 %v726, %v728
        %784 = vmax.xlane.f32.xlu0 %v783
        %v785 = vpop.xlane.xlu0 %784
        %v786 = vmax.f32 %v732, %v734
        %787 = vmax.xlane.f32.xlu0 %v786
        %v788 = vpop.xlane.xlu0 %787
        %v789 = vmax.f32 %v736, %v738
        %790 = vmax.xlane.f32.xlu0 %v789
        %v791 = vpop.xlane.xlu0 %790
        %v792 = vmax.f32 %v742, %v744
        %793 = vmax.xlane.f32.xlu0 %v792
        %v794 = vpop.xlane.xlu0 %793
        %v795 = vmax.f32 %v746, %v748
        %796 = vmax.xlane.f32.xlu0 %v795
        %v797 = vpop.xlane.xlu0 %796
        %v798 = vsub.f32 %v672, %v752
        %v799 = vsub.f32 %v674, %v752
        %v800 = vsub.f32 %v676, %v755
        %v801 = vsub.f32 %v678, %v755
        %v802 = vsub.f32 %v682, %v758
        %v803 = vsub.f32 %v684, %v758
        %v804 = vsub.f32 %v686, %v761
        %v805 = vsub.f32 %v688, %v761
        %v806 = vsub.f32 %v692, %v764
        %v807 = vsub.f32 %v694, %v764
        %v808 = vsub.f32 %v696, %v767
        %v809 = vsub.f32 %v698, %v767
        %v810 = vsub.f32 %v702, %v770
        %v811 = vsub.f32 %v704, %v770
        %v812 = vsub.f32 %v706, %v773
        %v813 = vsub.f32 %v708, %v773
        %v814 = vsub.f32 %v712, %v776
        %v815 = vsub.f32 %v714, %v776
        %v816 = vsub.f32 %v716, %v779
        %v817 = vsub.f32 %v718, %v779
        %v818 = vsub.f32 %v722, %v782
        %v819 = vsub.f32 %v724, %v782
        %v820 = vsub.f32 %v726, %v785
        %v821 = vsub.f32 %v728, %v785
        %v822 = vsub.f32 %v732, %v788
        %v823 = vsub.f32 %v734, %v788
        %v824 = vsub.f32 %v736, %v791
        %v825 = vsub.f32 %v738, %v791
        %v826 = vsub.f32 %v742, %v794
        %v827 = vsub.f32 %v744, %v794
        %v828 = vsub.f32 %v746, %v797
        %v829 = vsub.f32 %v748, %v797
        %v830 = vmul.f32 %v798, 1.442695
        %v831 = vpow.pop %v830
        %v832 = vmul.f32 %v799, 1.442695
        %v833 = vpow.pop %v832
        %v834 = vmul.f32 %v800, 1.442695
        %v835 = vpow.pop %v834
        %v836 = vmul.f32 %v801, 1.442695
        %v837 = vpow.pop %v836
        %v838 = vmul.f32 %v802, 1.442695
        %v839 = vpow.pop %v838
        %v840 = vmul.f32 %v803, 1.442695
        %v841 = vpow.pop %v840
        %v842 = vmul.f32 %v804, 1.442695
        %v843 = vpow.pop %v842
        %v844 = vmul.f32 %v805, 1.442695
        %v845 = vpow.pop %v844
        %v846 = vmul.f32 %v806, 1.442695
        %v847 = vpow.pop %v846
        %v848 = vmul.f32 %v807, 1.442695
        %v849 = vpow.pop %v848
        %v850 = vmul.f32 %v808, 1.442695
        %v851 = vpow.pop %v850
        %v852 = vmul.f32 %v809, 1.442695
        %v853 = vpow.pop %v852
        %v854 = vmul.f32 %v810, 1.442695
        %v855 = vpow.pop %v854
        %v856 = vmul.f32 %v811, 1.442695
        %v857 = vpow.pop %v856
        %v858 = vmul.f32 %v812, 1.442695
        %v859 = vpow.pop %v858
        %v860 = vmul.f32 %v813, 1.442695
        %v861 = vpow.pop %v860
        %v862 = vmul.f32 %v814, 1.442695
        %v863 = vpow.pop %v862
        %v864 = vmul.f32 %v815, 1.442695
        %v865 = vpow.pop %v864
        %v866 = vmul.f32 %v816, 1.442695
        %v867 = vpow.pop %v866
        %v868 = vmul.f32 %v817, 1.442695
        %v869 = vpow.pop %v868
        %v870 = vmul.f32 %v818, 1.442695
        %v871 = vpow.pop %v870
        %v872 = vmul.f32 %v819, 1.442695
        %v873 = vpow.pop %v872
        %v874 = vmul.f32 %v820, 1.442695
        %v875 = vpow.pop %v874
        %v876 = vmul.f32 %v821, 1.442695
        %v877 = vpow.pop %v876
        %v878 = vmul.f32 %v822, 1.442695
        %v879 = vpow.pop %v878
        %v880 = vmul.f32 %v823, 1.442695
        %v881 = vpow.pop %v880
        %v882 = vmul.f32 %v824, 1.442695
        %v883 = vpow.pop %v882
        %v884 = vmul.f32 %v825, 1.442695
        %v885 = vpow.pop %v884
        %v886 = vmul.f32 %v826, 1.442695
        %v887 = vpow.pop %v886
        %v888 = vmul.f32 %v827, 1.442695
        %v889 = vpow.pop %v888
        %v890 = vmul.f32 %v828, 1.442695
        %v891 = vpow.pop %v890
        %v892 = vmul.f32 %v829, 1.442695
        %v893 = vpow.pop %v892
        %v894 = vadd.f32 %v831, %v833
        %895 = vadd.xlane.f32.xlu0 %v894
        %v896 = vpop.xlane.xlu0 %895
        %v897 = vadd.f32 %v835, %v837
        %898 = vadd.xlane.f32.xlu0 %v897
        %v899 = vpop.xlane.xlu0 %898
        %v900 = vadd.f32 %v839, %v841
        %901 = vadd.xlane.f32.xlu0 %v900
        %v902 = vpop.xlane.xlu0 %901
        %v903 = vadd.f32 %v843, %v845
        %904 = vadd.xlane.f32.xlu0 %v903
        %v905 = vpop.xlane.xlu0 %904
        %v906 = vadd.f32 %v847, %v849
        %907 = vadd.xlane.f32.xlu0 %v906
        %v908 = vpop.xlane.xlu0 %907
        %v909 = vadd.f32 %v851, %v853
        %910 = vadd.xlane.f32.xlu0 %v909
        %v911 = vpop.xlane.xlu0 %910
        %v912 = vadd.f32 %v855, %v857
        %913 = vadd.xlane.f32.xlu0 %v912
        %v914 = vpop.xlane.xlu0 %913
        %v915 = vadd.f32 %v859, %v861
        %916 = vadd.xlane.f32.xlu0 %v915
        %v917 = vpop.xlane.xlu0 %916
        %v918 = vadd.f32 %v863, %v865
        %919 = vadd.xlane.f32.xlu0 %v918
        %v920 = vpop.xlane.xlu0 %919
        %v921 = vadd.f32 %v867, %v869
        %922 = vadd.xlane.f32.xlu0 %v921
        %v923 = vpop.xlane.xlu0 %922
        %v924 = vadd.f32 %v871, %v873
        %925 = vadd.xlane.f32.xlu0 %v924
        %v926 = vpop.xlane.xlu0 %925
        %v927 = vadd.f32 %v875, %v877
        %928 = vadd.xlane.f32.xlu0 %v927
        %v929 = vpop.xlane.xlu0 %928
        %v930 = vadd.f32 %v879, %v881
        %931 = vadd.xlane.f32.xlu0 %v930
        %v932 = vpop.xlane.xlu0 %931
        %v933 = vadd.f32 %v883, %v885
        %934 = vadd.xlane.f32.xlu0 %v933
        %v935 = vpop.xlane.xlu0 %934
        %v936 = vadd.f32 %v887, %v889
        %937 = vadd.xlane.f32.xlu0 %v936
        %v938 = vpop.xlane.xlu0 %937
        %v939 = vadd.f32 %v891, %v893
        %940 = vadd.xlane.f32.xlu0 %v939
        %v941 = vpop.xlane.xlu0 %940
        %v942 = vrcp.pop %v896
        %v943 = vmul.f32 1.0, %v942
        %v944 = vrcp.pop %v899
        %v945 = vmul.f32 1.0, %v944
        %v946 = vrcp.pop %v902
        %v947 = vmul.f32 1.0, %v946
        %v948 = vrcp.pop %v905
        %v949 = vmul.f32 1.0, %v948
        %v950 = vrcp.pop %v908
        %v951 = vmul.f32 1.0, %v950
        %v952 = vrcp.pop %v911
        %v953 = vmul.f32 1.0, %v952
        %v954 = vrcp.pop %v914
        %v955 = vmul.f32 1.0, %v954
        %v956 = vrcp.pop %v917
        %v957 = vmul.f32 1.0, %v956
        %v958 = vrcp.pop %v920
        %v959 = vmul.f32 1.0, %v958
        %v960 = vrcp.pop %v923
        %v961 = vmul.f32 1.0, %v960
        %v962 = vrcp.pop %v926
        %v963 = vmul.f32 1.0, %v962
        %v964 = vrcp.pop %v929
        %v965 = vmul.f32 1.0, %v964
        %v966 = vrcp.pop %v932
        %v967 = vmul.f32 1.0, %v966
        %v968 = vrcp.pop %v935
        %v969 = vmul.f32 1.0, %v968
        %v970 = vrcp.pop %v938
        %v971 = vmul.f32 1.0, %v970
        %v972 = vrcp.pop %v941
        %v973 = vmul.f32 1.0, %v972
        %v974 = vmul.f32 %v831, %v943
        %v975 = vmul.f32 %v833, %v943
        %v976 = vmul.f32 %v835, %v945
        %v977 = vmul.f32 %v837, %v945
        %v978 = vmul.f32 %v839, %v947
        %v979 = vmul.f32 %v841, %v947
        %v980 = vmul.f32 %v843, %v949
        %v981 = vmul.f32 %v845, %v949
        %v982 = vmul.f32 %v847, %v951
        %v983 = vmul.f32 %v849, %v951
        %v984 = vmul.f32 %v851, %v953
        %v985 = vmul.f32 %v853, %v953
        %v986 = vmul.f32 %v855, %v955
        %v987 = vmul.f32 %v857, %v955
        %v988 = vmul.f32 %v859, %v957
        %v989 = vmul.f32 %v861, %v957
        %v990 = vmul.f32 %v863, %v959
        %v991 = vmul.f32 %v865, %v959
        %v992 = vmul.f32 %v867, %v961
        %v993 = vmul.f32 %v869, %v961
        %v994 = vmul.f32 %v871, %v963
        %v995 = vmul.f32 %v873, %v963
        %v996 = vmul.f32 %v875, %v965
        %v997 = vmul.f32 %v877, %v965
        %v998 = vmul.f32 %v879, %v967
        %v999 = vmul.f32 %v881, %v967
        %v1000 = vmul.f32 %v883, %v969
        %v1001 = vmul.f32 %v885, %v969
        %v1002 = vmul.f32 %v887, %v971
        %v1003 = vmul.f32 %v889, %v971
        %v1004 = vmul.f32 %v891, %v973
        %v1005 = vmul.f32 %v893, %v973
        %v1006 = vpack.c.bf16 %v976, %v974
        %v1007 = vpack.c.bf16 %v977, %v975
        %v1008 = vpack.c.bf16 %v980, %v978
        %v1009 = vpack.c.bf16 %v981, %v979
        %v1010 = vpack.c.bf16 %v984, %v982
        %v1011 = vpack.c.bf16 %v985, %v983
        %v1012 = vpack.c.bf16 %v988, %v986
        %v1013 = vpack.c.bf16 %v989, %v987
        %v1014 = vpack.c.bf16 %v992, %v990
        %v1015 = vpack.c.bf16 %v993, %v991
        %v1016 = vpack.c.bf16 %v996, %v994
        %v1017 = vpack.c.bf16 %v997, %v995
        %v1018 = vpack.c.bf16 %v1000, %v998
        %v1019 = vpack.c.bf16 %v1001, %v999
        %v1020 = vpack.c.bf16 %v1004, %v1002
        %v1021 = vpack.c.bf16 %v1005, %v1003
        %v1022 = vld [vmem:[%s360] sm:$0xf]
        %v1023 = vld [vmem:[%s360 + $0x4] sm:$0xf]
        %v1024 = vld [vmem:[%s360 + $0x8] sm:$0xf]
        %v1025 = vld [vmem:[%s360 + $0xc] sm:$0xf]
        %v1026 = vld [vmem:[%s360 + $0x10] sm:$0xf]
        %v1027 = vld [vmem:[%s360 + $0x14] sm:$0xf]
        %v1028 = vld [vmem:[%s360 + $0x18] sm:$0xf]
        %v1029 = vld [vmem:[%s360 + $0x1c] sm:$0xf]
        %v1030 = vld [vmem:[%s360 + $0x20] sm:$0xf]
        %v1031 = vld [vmem:[%s360 + $0x24] sm:$0xf]
        %v1032 = vld [vmem:[%s360 + $0x28] sm:$0xf]
        %v1033 = vld [vmem:[%s360 + $0x2c] sm:$0xf]
        %v1034 = vld [vmem:[%s360 + $0x30] sm:$0xf]
        %v1035 = vld [vmem:[%s360 + $0x34] sm:$0xf]
        %v1036 = vld [vmem:[%s360 + $0x38] sm:$0xf]
        %v1037 = vld [vmem:[%s360 + $0x3c] sm:$0xf]
        %v1038 = vld [vmem:[%s360 + $0x40] sm:$0xf]
        %v1039 = vld [vmem:[%s360 + $0x44] sm:$0xf]
        %v1040 = vld [vmem:[%s360 + $0x48] sm:$0xf]
        %v1041 = vld [vmem:[%s360 + $0x4c] sm:$0xf]
        %v1042 = vld [vmem:[%s360 + $0x50] sm:$0xf]
        %v1043 = vld [vmem:[%s360 + $0x54] sm:$0xf]
        %v1044 = vld [vmem:[%s360 + $0x58] sm:$0xf]
        %v1045 = vld [vmem:[%s360 + $0x5c] sm:$0xf]
        %v1046 = vld [vmem:[%s360 + $0x60] sm:$0xf]
        %v1047 = vld [vmem:[%s360 + $0x64] sm:$0xf]
        %v1048 = vld [vmem:[%s360 + $0x68] sm:$0xf]
        %v1049 = vld [vmem:[%s360 + $0x6c] sm:$0xf]
        %v1050 = vld [vmem:[%s360 + $0x70] sm:$0xf]
        %v1051 = vld [vmem:[%s360 + $0x74] sm:$0xf]
        %v1052 = vld [vmem:[%s360 + $0x78] sm:$0xf]
        %v1053 = vld [vmem:[%s360 + $0x7c] sm:$0xf]
        %v1086 = vunpack.c.l.b16 %v1022
        %v1087 = vunpack.c.l.b16 %v1023
        %v1088 = vunpack.c.l.b16 %v1024
        %v1089 = vunpack.c.l.b16 %v1025
        %v1090 = vunpack.c.l.b16 %v1026
        %v1091 = vunpack.c.l.b16 %v1027
        %v1092 = vunpack.c.l.b16 %v1028
        %v1093 = vunpack.c.l.b16 %v1029
        %v1094 = vunpack.c.l.b16 %v1030
        %v1095 = vunpack.c.l.b16 %v1031
        %v1096 = vunpack.c.l.b16 %v1032
        %v1097 = vunpack.c.l.b16 %v1033
        %v1098 = vunpack.c.l.b16 %v1034
        %v1099 = vunpack.c.l.b16 %v1035
        %v1100 = vunpack.c.l.b16 %v1036
        %v1101 = vunpack.c.l.b16 %v1037
        %v1102 = vunpack.c.l.b16 %v1038
        %v1103 = vunpack.c.l.b16 %v1039
        %v1104 = vunpack.c.l.b16 %v1040
        %v1105 = vunpack.c.l.b16 %v1041
        %v1106 = vunpack.c.l.b16 %v1042
        %v1107 = vunpack.c.l.b16 %v1043
        %v1108 = vunpack.c.l.b16 %v1044
        %v1109 = vunpack.c.l.b16 %v1045
        %v1110 = vunpack.c.l.b16 %v1046
        %v1111 = vunpack.c.l.b16 %v1047
        %v1112 = vunpack.c.l.b16 %v1048
        %v1113 = vunpack.c.l.b16 %v1049
        %v1114 = vunpack.c.l.b16 %v1050
        %v1115 = vunpack.c.l.b16 %v1051
        %v1116 = vunpack.c.l.b16 %v1052
        %v1117 = vunpack.c.l.b16 %v1053
        %v1118 = vpack.c.b16 %v1087, %v1086
        %v1119 = vpack.c.b16 %v1089, %v1088
        %v1120 = vpack.c.b16 %v1091, %v1090
        %v1121 = vpack.c.b16 %v1093, %v1092
        %v1122 = vpack.c.b16 %v1095, %v1094
        %v1123 = vpack.c.b16 %v1097, %v1096
        %v1124 = vpack.c.b16 %v1099, %v1098
        %v1125 = vpack.c.b16 %v1101, %v1100
        %v1126 = vpack.c.b16 %v1103, %v1102
        %v1127 = vpack.c.b16 %v1105, %v1104
        %v1128 = vpack.c.b16 %v1107, %v1106
        %v1129 = vpack.c.b16 %v1109, %v1108
        %v1130 = vpack.c.b16 %v1111, %v1110
        %v1131 = vpack.c.b16 %v1113, %v1112
        %v1132 = vpack.c.b16 %v1115, %v1114
        %v1133 = vpack.c.b16 %v1117, %v1116
        %1150 = vmatprep.subr.bf16.mxu0 0
        %1151 = vmatpush1.bf16.msra.mxu0 %v1118
        %1152 = vmatprep.subr.bf16.mxu0 0
        %1153 = vmatpush1.bf16.msra.mxu0 %v1119
        %1154 = vmatprep.subr.bf16.mxu0 0
        %1155 = vmatpush1.bf16.msra.mxu0 %v1120
        %1156 = vmatprep.subr.bf16.mxu0 0
        %1157 = vmatpush1.bf16.msra.mxu0 %v1121
        %1158 = vmatprep.subr.bf16.mxu0 0
        %1159 = vmatpush1.bf16.msra.mxu0 %v1122
        %1160 = vmatprep.subr.bf16.mxu0 0
        %1161 = vmatpush1.bf16.msra.mxu0 %v1123
        %1162 = vmatprep.subr.bf16.mxu0 0
        %1163 = vmatpush1.bf16.msra.mxu0 %v1124
        %1164 = vmatprep.subr.bf16.mxu0 0
        %1165 = vmatpush1.bf16.msra.mxu0 %v1125
        %1166 = vmatprep.subr.bf16.mxu0 0
        %1167 = vmatpush1.bf16.msra.mxu0 %v1126
        %1168 = vmatprep.subr.bf16.mxu0 0
        %1169 = vmatpush1.bf16.msra.mxu0 %v1127
        %1170 = vmatprep.subr.bf16.mxu0 0
        %1171 = vmatpush1.bf16.msra.mxu0 %v1128
        %1172 = vmatprep.subr.bf16.mxu0 0
        %1173 = vmatpush1.bf16.msra.mxu0 %v1129
        %1174 = vmatprep.subr.bf16.mxu0 0
        %1175 = vmatpush1.bf16.msra.mxu0 %v1130
        %1176 = vmatprep.subr.bf16.mxu0 0
        %1177 = vmatpush1.bf16.msra.mxu0 %v1131
        %1178 = vmatprep.subr.bf16.mxu0 0
        %1179 = vmatpush1.bf16.msra.mxu0 %v1132
        %1180 = vmatprep.subr.bf16.mxu0 0
        %1181 = vmatpush1.bf16.msra.mxu0 %v1133
        %1182 = vmatprep.mubr.bf16.mxu0 %v1007
        %1183 = vmatmul.mubr.bf16.gmra.mrb[0].mxu0 %v1006
        %v1184 = vpop.f32.mrb[0].mxu0
        %v1185 = vadd.f32 0.0, %v1184
        %v1186 = vpop.f32.mrb[0].mxu0
        %v1187 = vpop.f32.mrb[0].mxu0
        %v1188 = vadd.f32 0.0, %v1187
        %v1189 = vpop.f32.mrb[0].mxu0
        %1190 = vmatprep.mubr.bf16.mxu0 %v1009
        %1191 = vmatmul.mubr.bf16.gmra.mrb[0].mxu0 %v1008
        %v1192 = vpop.f32.mrb[0].mxu0
        %v1193 = vadd.f32 0.0, %v1192
        %v1194 = vpop.f32.mrb[0].mxu0
        %v1195 = vpop.f32.mrb[0].mxu0
        %v1196 = vadd.f32 0.0, %v1195
        %v1197 = vpop.f32.mrb[0].mxu0
        %1198 = vmatprep.mubr.bf16.mxu0 %v1011
        %1199 = vmatmul.mubr.bf16.gmra.mrb[0].mxu0 %v1010
        %v1200 = vpop.f32.mrb[0].mxu0
        %v1201 = vadd.f32 0.0, %v1200
        %v1202 = vpop.f32.mrb[0].mxu0
        %v1203 = vpop.f32.mrb[0].mxu0
        %v1204 = vadd.f32 0.0, %v1203
        %v1205 = vpop.f32.mrb[0].mxu0
        %1206 = vmatprep.mubr.bf16.mxu0 %v1013
        %1207 = vmatmul.mubr.bf16.gmra.mrb[0].mxu0 %v1012
        %v1208 = vpop.f32.mrb[0].mxu0
        %v1209 = vadd.f32 0.0, %v1208
        %v1210 = vpop.f32.mrb[0].mxu0
        %v1211 = vpop.f32.mrb[0].mxu0
        %v1212 = vadd.f32 0.0, %v1211
        %v1213 = vpop.f32.mrb[0].mxu0
        %1214 = vmatprep.mubr.bf16.mxu0 %v1015
        %1215 = vmatmul.mubr.bf16.gmra.mrb[0].mxu0 %v1014
        %v1216 = vpop.f32.mrb[0].mxu0
        %v1217 = vadd.f32 0.0, %v1216
        %v1218 = vpop.f32.mrb[0].mxu0
        %v1219 = vpop.f32.mrb[0].mxu0
        %v1220 = vadd.f32 0.0, %v1219
        %v1221 = vpop.f32.mrb[0].mxu0
        %1222 = vmatprep.mubr.bf16.mxu0 %v1017
        %1223 = vmatmul.mubr.bf16.gmra.mrb[0].mxu0 %v1016
        %v1224 = vpop.f32.mrb[0].mxu0
        %v1225 = vadd.f32 0.0, %v1224
        %v1226 = vpop.f32.mrb[0].mxu0
        %v1227 = vpop.f32.mrb[0].mxu0
        %v1228 = vadd.f32 0.0, %v1227
        %v1229 = vpop.f32.mrb[0].mxu0
        %1230 = vmatprep.mubr.bf16.mxu0 %v1019
        %1231 = vmatmul.mubr.bf16.gmra.mrb[0].mxu0 %v1018
        %v1232 = vpop.f32.mrb[0].mxu0
        %v1233 = vadd.f32 0.0, %v1232
        %v1234 = vpop.f32.mrb[0].mxu0
        %v1235 = vpop.f32.mrb[0].mxu0
        %v1236 = vadd.f32 0.0, %v1235
        %v1237 = vpop.f32.mrb[0].mxu0
        %1238 = vmatprep.mubr.bf16.mxu0 %v1021
        %1239 = vmatmul.mubr.bf16.gmra.mrb[0].mxu0 %v1020
        %v1240 = vpop.f32.mrb[0].mxu0
        %v1241 = vadd.f32 0.0, %v1240
        %v1242 = vpop.f32.mrb[0].mxu0
        %v1243 = vpop.f32.mrb[0].mxu0
        %v1244 = vadd.f32 0.0, %v1243
        %v1245 = vpop.f32.mrb[0].mxu0
        %1246 = vdwg.mxu0
        %s1247 = sld [smem:[#allocation2]]
        %v1248 = vstv %s1247
        %v1249 = vmul.f32 %v1248, %v1185
        %v1250 = vmul.f32 %v1248, %v1188
        %v1251 = vmul.f32 %v1248, %v1193
        %v1252 = vmul.f32 %v1248, %v1196
        %v1253 = vmul.f32 %v1248, %v1201
        %v1254 = vmul.f32 %v1248, %v1204
        %v1255 = vmul.f32 %v1248, %v1209
        %v1256 = vmul.f32 %v1248, %v1212
        %v1257 = vmul.f32 %v1248, %v1217
        %v1258 = vmul.f32 %v1248, %v1220
        %v1259 = vmul.f32 %v1248, %v1225
        %v1260 = vmul.f32 %v1248, %v1228
        %v1261 = vmul.f32 %v1248, %v1233
        %v1262 = vmul.f32 %v1248, %v1236
        %v1263 = vmul.f32 %v1248, %v1241
        %v1264 = vmul.f32 %v1248, %v1244
        %v1265 = vadd.f32 %v1249, %v364
        %v1266 = vadd.f32 %v1250, %v365
        %v1267 = vadd.f32 %v1251, %v366
        %v1268 = vadd.f32 %v1252, %v367
        %v1269 = vadd.f32 %v1253, %v368
        %v1270 = vadd.f32 %v1254, %v369
        %v1271 = vadd.f32 %v1255, %v370
        %v1272 = vadd.f32 %v1256, %v371
        %v1273 = vadd.f32 %v1257, %v372
        %v1274 = vadd.f32 %v1258, %v373
        %v1275 = vadd.f32 %v1259, %v374
        %v1276 = vadd.f32 %v1260, %v375
        %v1277 = vadd.f32 %v1261, %v376
        %v1278 = vadd.f32 %v1262, %v377
        %v1279 = vadd.f32 %v1263, %v378
        %v1280 = vadd.f32 %v1264, %v379
        %1281 = vst.msk [vmem:[%s333] sm:$0xff] %vm411, %v1265
        %1282 = vst.msk [vmem:[%s333 + $0x8] sm:$0xff] %vm411, %v1266
        %1283 = vst.msk [vmem:[%s333 + $0x10] sm:$0xff] %vm411, %v1267
        %1284 = vst.msk [vmem:[%s333 + $0x18] sm:$0xff] %vm411, %v1268
        %1285 = vst.msk [vmem:[%s333 + $0x20] sm:$0xff] %vm411, %v1269
        %1286 = vst.msk [vmem:[%s333 + $0x28] sm:$0xff] %vm411, %v1270
        %1287 = vst.msk [vmem:[%s333 + $0x30] sm:$0xff] %vm411, %v1271
        %1288 = vst.msk [vmem:[%s333 + $0x38] sm:$0xff] %vm411, %v1272
        %1289 = vst.msk [vmem:[%s333 + $0x40] sm:$0xff] %vm411, %v1273
        %1290 = vst.msk [vmem:[%s333 + $0x48] sm:$0xff] %vm411, %v1274
        %1291 = vst.msk [vmem:[%s333 + $0x50] sm:$0xff] %vm411, %v1275
        %1292 = vst.msk [vmem:[%s333 + $0x58] sm:$0xff] %vm411, %v1276
        %1293 = vst.msk [vmem:[%s333 + $0x60] sm:$0xff] %vm411, %v1277
        %1294 = vst.msk [vmem:[%s333 + $0x68] sm:$0xff] %vm411, %v1278
        %1295 = vst.msk [vmem:[%s333 + $0x70] sm:$0xff] %vm411, %v1279
        %1296 = vst.msk [vmem:[%s333 + $0x78] sm:$0xff] %vm411, %v1280
        %v1313 = vunpack.c.l.b16 %v1006
        %v1314 = vunpack.c.l.b16 %v1007
        %v1315 = vunpack.c.h.b16 %v1006
        %v1316 = vunpack.c.h.b16 %v1007
        %v1317 = vunpack.c.l.b16 %v1008
        %v1318 = vunpack.c.l.b16 %v1009
        %v1319 = vunpack.c.h.b16 %v1008
        %v1320 = vunpack.c.h.b16 %v1009
        %v1321 = vunpack.c.l.b16 %v1010
        %v1322 = vunpack.c.l.b16 %v1011
        %v1323 = vunpack.c.h.b16 %v1010
        %v1324 = vunpack.c.h.b16 %v1011
        %v1325 = vunpack.c.l.b16 %v1012
        %v1326 = vunpack.c.l.b16 %v1013
        %v1327 = vunpack.c.h.b16 %v1012
        %v1328 = vunpack.c.h.b16 %v1013
        %v1329 = vunpack.c.l.b16 %v1014
        %v1330 = vunpack.c.l.b16 %v1015
        %v1331 = vunpack.c.h.b16 %v1014
        %v1332 = vunpack.c.h.b16 %v1015
        %v1333 = vunpack.c.l.b16 %v1016
        %v1334 = vunpack.c.l.b16 %v1017
        %v1335 = vunpack.c.h.b16 %v1016
        %v1336 = vunpack.c.h.b16 %v1017
        %v1337 = vunpack.c.l.b16 %v1018
        %v1338 = vunpack.c.l.b16 %v1019
        %v1339 = vunpack.c.h.b16 %v1018
        %v1340 = vunpack.c.h.b16 %v1019
        %v1341 = vunpack.c.l.b16 %v1020
        %v1342 = vunpack.c.l.b16 %v1021
        %v1343 = vunpack.c.h.b16 %v1020
        %v1344 = vunpack.c.h.b16 %v1021
        %v1345 = vpack.c.b16 %v1314, %v1313
        %v1346 = vpack.c.b16 %v1316, %v1315
        %v1347 = vpack.c.b16 %v1318, %v1317
        %v1348 = vpack.c.b16 %v1320, %v1319
        %v1349 = vpack.c.b16 %v1322, %v1321
        %v1350 = vpack.c.b16 %v1324, %v1323
        %v1351 = vpack.c.b16 %v1326, %v1325
        %v1352 = vpack.c.b16 %v1328, %v1327
        %v1353 = vpack.c.b16 %v1330, %v1329
        %v1354 = vpack.c.b16 %v1332, %v1331
        %v1355 = vpack.c.b16 %v1334, %v1333
        %v1356 = vpack.c.b16 %v1336, %v1335
        %v1357 = vpack.c.b16 %v1338, %v1337
        %v1358 = vpack.c.b16 %v1340, %v1339
        %v1359 = vpack.c.b16 %v1342, %v1341
        %v1360 = vpack.c.b16 %v1344, %v1343
        %1377 = vst [vmem:[%s340] sm:$0xff] %v1345
        %1378 = vst [vmem:[%s340 + $0x8] sm:$0xff] %v1346
        %1379 = vst [vmem:[%s340 + $0x10] sm:$0xff] %v1347
        %1380 = vst [vmem:[%s340 + $0x18] sm:$0xff] %v1348
        %1381 = vst [vmem:[%s340 + $0x20] sm:$0xff] %v1349
        %1382 = vst [vmem:[%s340 + $0x28] sm:$0xff] %v1350
        %1383 = vst [vmem:[%s340 + $0x30] sm:$0xff] %v1351
        %1384 = vst [vmem:[%s340 + $0x38] sm:$0xff] %v1352
        %1385 = vst [vmem:[%s340 + $0x40] sm:$0xff] %v1353
        %1386 = vst [vmem:[%s340 + $0x48] sm:$0xff] %v1354
        %1387 = vst [vmem:[%s340 + $0x50] sm:$0xff] %v1355
        %1388 = vst [vmem:[%s340 + $0x58] sm:$0xff] %v1356
        %1389 = vst [vmem:[%s340 + $0x60] sm:$0xff] %v1357
        %1390 = vst [vmem:[%s340 + $0x68] sm:$0xff] %v1358
        %1391 = vst [vmem:[%s340 + $0x70] sm:$0xff] %v1359
        %1392 = vst [vmem:[%s340 + $0x78] sm:$0xff] %v1360
        %s1393 = sand.u32 %s191, 1
        %s1394 = scalar_lea.sflag [#allocation4], %s1393
        %s1395 = sand.u32 %s191, 1
        %s1396 = smul.addr %s1395, 128
        %s1397 = scalar_lea.vmem [#allocation3], %s1396
        %s1398 = sand.u32 %s219, 1
        %s1399 = scalar_lea.sflag [#allocation6], %s1398
        %s1400 = sand.u32 %s219, 1
        %s1401 = smul.addr %s1400, 128
        %s1402 = scalar_lea.vmem [#allocation5], %s1401
        // Predicated region
        $region45: #{self_attn_forward.1} parent=43 // pred_check
          %p1403 = pneg %p201
        $region46: #{self_attn_forward.1} parent=43 // pred_check_branch
          %1405 = sbr.rel (%p1403) target = $region48
        $region47: #{self_attn_forward.1} parent=43 // pred_region
          %s1406 = smul.u32 16, %s31
          %s1408 = ssub.s32 2048, 2048
          %1409 = vsyncadd %s1394, %s1408
          %s1410 = smul.addr %s30, 32
          %s1411 = sadd.s32 %s1406, %s1410
          %s1412 = smul.addr %s1411, 128
          %s1413 = scalar_lea.hbm %s6, %s1412
          %s1414 = sshll.u32 %s1397, 4
          %s1415 = int_to_ptr.vmem [resolvable:$true] %s1414
          %1420 = dma.vmem_to_hbm [thread:$0]  %s1415, 2048, %s1413, %s1394, 128, 128, 8
        $region48: #{self_attn_forward.1} parent=43 // pred_fallthru
          _
        // Predicated region
        $region49: #{self_attn_forward.1} parent=43 // pred_check
          %p1421 = pneg %p229
        $region50: #{self_attn_forward.1} parent=43 // pred_check_branch
          %1423 = sbr.rel (%p1421) target = $region52
        $region51: #{self_attn_forward.1} parent=43 // pred_region
          %s1424 = smul.u32 16, %s31
          %s1426 = ssub.s32 2048, 2048
          %1427 = vsyncadd %s1399, %s1426
          %s1428 = smul.addr %s1424, 2
          %s1429 = smul.addr %s30, 64
          %s1430 = sadd.s32 %s1428, %s1429
          %s1431 = smul.addr %s1430, 64
          %s1432 = scalar_lea.hbm %s7, %s1431
          %s1433 = sshll.u32 %s1402, 4
          %s1434 = int_to_ptr.vmem [resolvable:$true] %s1433
          %1439 = dma.vmem_to_hbm [thread:$0]  %s1434, 2048, %s1432, %s1399, 128, 128, 8
        $region52: #{self_attn_forward.1} parent=43 // pred_fallthru
          _
      $region44: #{self_attn_forward.1} parent=5 // pred_fallthru
        _
      %p1440 = scmp.le.s32.totalorder 2, %s21
      // Predicated region
      $region53: #{self_attn_forward.1} parent=5 // pred_check
        %p1441 = pneg %p1440
      $region54: #{self_attn_forward.1} parent=5 // pred_check_branch
        %1443 = sbr.rel (%p1441) target = $region56
      $region55: #{self_attn_forward.1} parent=5 // pred_region
        %s1444 = ssub.s32 %s21, 2
        // Predicated region
        $region57: #{self_attn_forward.1} parent=55 // pred_check
          %p1445 = pneg %p207
        $region58: #{self_attn_forward.1} parent=55 // pred_check_branch
          %1447 = sbr.rel (%p1445) target = $region60
        $region59: #{self_attn_forward.1} parent=55 // pred_region
          %s1448 = sand.u32 %s192, 1
          %s1449 = scalar_lea.sflag [#allocation4], %s1448
          %s1450 = sand.u32 %s192, 1
          %s1451 = smul.addr %s1450, 128
          %s1452 = scalar_lea.vmem [#allocation3], %s1451
          %1453 = dma.done %s1449, 2048
        $region60: #{self_attn_forward.1} parent=55 // pred_fallthru
          _
        // Predicated region
        $region61: #{self_attn_forward.1} parent=55 // pred_check
          %p1454 = pneg %p235
        $region62: #{self_attn_forward.1} parent=55 // pred_check_branch
          %1456 = sbr.rel (%p1454) target = $region64
        $region63: #{self_attn_forward.1} parent=55 // pred_region
          %s1457 = sand.u32 %s220, 1
          %s1458 = scalar_lea.sflag [#allocation6], %s1457
          %s1459 = sand.u32 %s220, 1
          %s1460 = smul.addr %s1459, 128
          %s1461 = scalar_lea.vmem [#allocation5], %s1460
          %1462 = dma.done %s1458, 2048
        $region64: #{self_attn_forward.1} parent=55 // pred_fallthru
          _
      $region56: #{self_attn_forward.1} parent=5 // pred_fallthru
        _
    $region6: #{self_attn_forward.1} parent=1 // loop_footer
      %s25 = sadd.s32 1, %s21
    $region7: #{self_attn_forward.1} parent=1 // loop_footer_branch
      %20 = sbr.rel target = $region3
    $region8: #{self_attn_forward.1} parent=1 // loop_exit
      _
    %1463 = vsyncpa [#allocation4], 1
    %s1464 = scalar_lea.sflag [#allocation4], 1
    %1465 = vsyncpa %s1464, 1
    %1466 = vsyncpa [#allocation6], 1
    %s1467 = scalar_lea.sflag [#allocation6], 1
    %1468 = vsyncpa %s1467, 1

</llo_original>
